<compile_context>
chip_gen: v7x
topology: tpu7x:2x2x1
jax: 0.10.0
libtpu: 0.0.40
codegen_flags: <defaults>
</compile_context>

<pallas_src>
import jax
import jax.numpy as jnp
from jax.experimental import pallas as pl
from jax.experimental.pallas import tpu as pltpu

_LANE = 128      # lane width: internal (hidden) feature dims padded to this
_SUBLANE = 8     # sublane width: batch tiles are multiples of this


def _round_up(n, m):
    return ((n + m - 1) // m) * m


def _is_pre_v6_device():
    """True on chips without a bf16 VPU (v5e and older) -> keep elementwise f32."""
    try:
        kind = jax.devices()[0].device_kind.lower()
    except Exception:
        return True  # unknown -> be conservative
    return any(tag in kind for tag in ("v2", "v3", "v4", "v5"))


# --------------------------------------------------------------------------- #
# Kernel
# --------------------------------------------------------------------------- #
def _make_mlp_kernel(num_linear, elementwise_bf16):
    """Fused MLP body.  Ref order: x, w0, b0, w1, b1, ..., wL, bL, out."""
    act_dtype = jnp.bfloat16 if elementwise_bf16 else jnp.float32

    def kernel(*refs):
        x_ref = refs[0]
        param_refs = refs[1:1 + 2 * num_linear]
        out_ref = refs[1 + 2 * num_linear]

        h = x_ref[...]                                       # bf16 or f32 tile
        for l in range(num_linear):
            w = param_refs[2 * l][...]                       # bf16 or f32 weights
            b = param_refs[2 * l + 1][...]                   # (1, dout) f32 bias
            acc = jnp.dot(h.astype(w.dtype), w,
                          preferred_element_type=jnp.float32)
            if l < num_linear - 1:
                # hidden layer: bias + LeakyReLU(0.2).  bf16 on v6e/v7x VPU,
                # f32 on v5e; next matmul consumes it directly.
                hb = acc.astype(act_dtype) + b.astype(act_dtype)
                h = jnp.where(hb >= 0, hb, 0.2 * hb)
            else:
                # final layer: keep f32 accumulation for the output.
                out_ref[...] = (acc + b).astype(out_ref.dtype)

    return kernel


# --------------------------------------------------------------------------- #
# Parameter preparation (do ONCE, reuse across forward calls)
# --------------------------------------------------------------------------- #
def prepare_mlp_params(params, mask=None, *, use_bf16=True):
    """Pad / cast static parameters once.

    params : list of (W, b) with W of shape (in_dim, out_dim) (transpose of
             PyTorch Linear.weight, so h @ W + b == Linear(h)).
    mask   : optional (in_features,) multiplicative input mask, folded exactly
             into W0:  (x * m) @ W0 == x @ (W0 * m[:, None]).

    Only internal (hidden) dims are zero-padded to multiples of 128; the
    external in_features / out_features stay at natural width so the
    batch-scaling HBM streams carry no padding.
    """
    params = list(params)
    num_linear = len(params)
    mm_dtype = jnp.bfloat16 if use_bf16 else jnp.float32

    if mask is not None:
        w0, b0 = params[0]
        m = jnp.asarray(mask).reshape(-1, 1).astype(jnp.float32)
        params[0] = (w0.astype(jnp.float32) * m, b0)

    layers, dims = [], []
    for l, (w, b) in enumerate(params):
        din, dout = w.shape
        din_p = din if l == 0 else _round_up(din, _LANE)
        dout_p = dout if l == num_linear - 1 else _round_up(dout, _LANE)
        w_p = (jnp.zeros((din_p, dout_p), jnp.float32)
               .at[:din, :dout].set(w.astype(jnp.float32))).astype(mm_dtype)
        b_p = (jnp.zeros((1, dout_p), jnp.float32)
               .at[0, :dout].set(b.astype(jnp.float32)))       # bias stays f32
        layers.append((w_p, b_p))
        dims.append((din_p, dout_p))

    return dict(layers=layers, dims=dims, use_bf16=use_bf16,
                in_features=params[0][0].shape[0],
                out_features=params[-1][0].shape[1])


# --------------------------------------------------------------------------- #
# pallas_call wrapper
# --------------------------------------------------------------------------- #
def _vmem_limit_bytes(bb, in_features, out_features, dims, x_itemsize, w_itemsize):
    x_stream = 2 * bb * in_features * x_itemsize          # double-buffered x tile
    out_stream = 2 * bb * out_features * 4                # double-buffered f32 out
    param_bytes = sum(dp * op * w_itemsize + op * 4 for dp, op in dims)
    widest = max(op for _, op in dims)
    intermediates = 4 * bb * widest * 4                   # a few (bb, hidden) f32 temps
    need = x_stream + out_stream + 2 * param_bytes + intermediates
    # generous compiler-scratch headroom, capped well under v7x's 64 MiB / TC
    return int(min(max(need + 8 * 1024 * 1024, 16 * 1024 * 1024),
                   48 * 1024 * 1024))


def _pallas_forward(x_in, flat_params, *, bb, grid_len, dims, in_features,
                    out_features, num_linear, elementwise_bf16,
                    single_buffer_weights, vmem_limit, out_dtype):
    def invariant_spec(shape):
        # grid-invariant operand (index_map == (0,0) for every step): double
        # buffering buys nothing, so single-buffer it when supported.
        if single_buffer_weights:
            return pl.BlockSpec(shape, lambda i: (0, 0),
                                pipeline_mode=pl.Buffered(1))
        return pl.BlockSpec(shape, lambda i: (0, 0))

    in_specs = [pl.BlockSpec((bb, in_features), lambda i: (i, 0))]
    for din_p, dout_p in dims:
        in_specs.append(invariant_spec((din_p, dout_p)))
        in_specs.append(invariant_spec((1, dout_p)))
    out_spec = pl.BlockSpec((bb, out_features), lambda i: (i, 0))

    B_pad = grid_len * bb
    return pl.pallas_call(
        _make_mlp_kernel(num_linear, elementwise_bf16),
        out_shape=jax.ShapeDtypeStruct((B_pad, out_features), out_dtype),
        grid_spec=pltpu.PrefetchScalarGridSpec(
            num_scalar_prefetch=0,
            grid=(grid_len,),
            in_specs=in_specs,
            out_specs=out_spec,
        ),
        compiler_params=pltpu.CompilerParams(
            dimension_semantics=("parallel",),
            vmem_limit_bytes=vmem_limit,
        ),
    )(x_in, *flat_params)


def nlayer_leaky_mlp(x, params=None, mask=None, *, prepared=None,
                     block_batch=512, use_bf16=True, elementwise_bf16=None,
                     min_grid=4):
    """Forward pass of NLayerLeakyMLP.

    Either pass raw `params` (+ optional `mask`) or a `prepared` dict from
    prepare_mlp_params() (preferred: prepare once, call many times).
    """
    if prepared is None:
        prepared = prepare_mlp_params(params, mask=mask, use_bf16=use_bf16)
    use_bf16 = prepared["use_bf16"]
    if elementwise_bf16 is None:
        elementwise_bf16 = use_bf16 and not _is_pre_v6_device()

    B, in_features = x.shape
    assert in_features == prepared["in_features"], "x width != param in_features"
    out_features = prepared["out_features"]
    dims = prepared["dims"]
    num_linear = len(prepared["layers"])

    # Batch tiling: pad B only to a multiple of 8, cap the tile so there are at
    # least `min_grid` steps (pipeline overlap + both v7x TCs) and padding
    # waste stays small.
    B8 = _round_up(max(B, 1), _SUBLANE)
    bb_cap = max(_SUBLANE, _round_up(pl.cdiv(B8, min_grid), _SUBLANE))
    bb = max(_SUBLANE, min(_round_up(block_batch, _SUBLANE), bb_cap))
    grid_len = pl.cdiv(B8, bb)
    B_pad = grid_len * bb

    x_dtype = jnp.bfloat16 if use_bf16 else jnp.float32
    x_in = x.astype(x_dtype)
    if B_pad != B:
        x_in = jnp.pad(x_in, ((0, B_pad - B), (0, 0)))

    flat_params = []
    for w_p, b_p in prepared["layers"]:
        flat_params.append(w_p)
        flat_params.append(b_p)

    vmem_limit = _vmem_limit_bytes(bb, in_features, out_features, dims,
                                   x_in.dtype.itemsize,
                                   flat_params[0].dtype.itemsize)

    kwargs = dict(bb=bb, grid_len=grid_len, dims=dims, in_features=in_features,
                  out_features=out_features, num_linear=num_linear,
                  elementwise_bf16=elementwise_bf16, vmem_limit=vmem_limit,
                  out_dtype=jnp.float32)
    try:
        out = _pallas_forward(x_in, flat_params, single_buffer_weights=True,
                              **kwargs)
    except Exception:
        # JAX build without BlockSpec(pipeline_mode=pl.Buffered(1)) support:
        # fall back to default double-buffered (still grid-invariant) weights.
        out = _pallas_forward(x_in, flat_params, single_buffer_weights=False,
                              **kwargs)

    if B_pad != B:
        out = out[:B]
    if out.dtype != x.dtype:
        out = out.astype(x.dtype)
    return out


# --------------------------------------------------------------------------- #
# Test / reference
# --------------------------------------------------------------------------- #
def init_params(key, in_features, out_features, num_layers, hidden_dim=64):
    """nn.Linear-style uniform(-1/sqrt(fan_in), 1/sqrt(fan_in)) init.
    Weights stored as (in_dim, out_dim) (transposed vs. PyTorch's (out, in))."""
    dims = []
    for l in range(num_layers):
        dims.append((in_features if l == 0 else hidden_dim, hidden_dim))
    dims.append((hidden_dim if num_layers > 0 else in_features, out_features))

    params = []
    for (din, dout) in dims:
        key, kw, kb = jax.random.split(key, 3)
        bound = 1.0 / jnp.sqrt(jnp.float32(din))
        w = jax.random.uniform(kw, (din, dout), jnp.float32, -bound, bound)
        b = jax.random.uniform(kb, (dout,), jnp.float32, -bound, bound)
        params.append((w, b))
    return params


def reference_forward(x, params, mask=None):
    h = x
    if mask is not None:
        h = h * mask
    n = len(params)
    for l, (w, b) in enumerate(params):
        h = h @ w + b
        if l < n - 1:
            h = jnp.where(h >= 0.0, h, 0.2 * h)
    return h


if __name__ == "__main__":
    key = jax.random.PRNGKey(0)

    batch = 256
    in_features = 16
    out_features = 8
    hidden_dim = 64
    num_layers = 2
    block_batch = 128   # cap; tiling logic yields bb=64, grid=(4,)

    k_x, k_p, k_m = jax.random.split(key, 3)
    x = jax.random.normal(k_x, (batch, in_features), jnp.float32)
    params = init_params(k_p, in_features, out_features, num_layers, hidden_dim)
    mask = (jax.random.uniform(k_m, (in_features,)) > 0.3).astype(jnp.float32)

    # 1) pure-f32 kernel, no mask (module default) -> tight tolerance.
    prep_f32 = prepare_mlp_params(params, mask=None, use_bf16=False)
    out_f32 = jax.block_until_ready(
        nlayer_leaky_mlp(x, prepared=prep_f32, block_batch=block_batch))
    ref = reference_forward(x, params, mask=None)
    assert out_f32.shape == (batch, out_features)
    assert jnp.allclose(out_f32, ref, atol=1e-5, rtol=1e-5), "f32 mismatch vs reference"

    # 2) bf16-MXU kernel with mask folded into W0 -> looser tolerance.
    prep_bf16 = prepare_mlp_params(params, mask=mask, use_bf16=True)
    out_bf16 = jax.block_until_ready(
        nlayer_leaky_mlp(x, prepared=prep_bf16, block_batch=block_batch))
    ref_m = reference_forward(x, params, mask=mask)
    assert out_bf16.shape == (batch, out_features)
    assert jnp.allclose(out_bf16, ref_m, atol=5e-2, rtol=5e-2), "bf16 mismatch vs reference"

    # 3) ragged batch (exercises minimal batch padding + slice-off path).
    x_odd = jax.random.normal(k_x, (batch - 3, in_features), jnp.float32)
    out_odd = jax.block_until_ready(
        nlayer_leaky_mlp(x_odd, prepared=prep_f32, block_batch=block_batch))
    ref_odd = reference_forward(x_odd, params, mask=None)
    assert out_odd.shape == (batch - 3, out_features)
    assert jnp.allclose(out_odd, ref_odd, atol=1e-5, rtol=1e-5), "ragged-batch mismatch"

    print("KERNEL_OK")
</pallas_src>

<mosaic_0001>
module attributes {stable_mosaic.version = 11 : i64} {
  func.func @kernel(%arg0: i32, %arg1: memref<64x16xf32, #tpu.memory_space<vmem>>, %arg2: memref<16x128xf32, #tpu.memory_space<vmem>>, %arg3: memref<1x128xf32, #tpu.memory_space<vmem>>, %arg4: memref<128x128xf32, #tpu.memory_space<vmem>>, %arg5: memref<1x128xf32, #tpu.memory_space<vmem>>, %arg6: memref<128x8xf32, #tpu.memory_space<vmem>>, %arg7: memref<1x8xf32, #tpu.memory_space<vmem>>, %arg8: memref<64x8xf32, #tpu.memory_space<vmem>>) attributes {dimension_semantics = [#tpu.dimension_semantics<parallel>], iteration_bounds = array<i64: 4>, scalar_prefetch = 0 : i64, scratch_operands = 0 : i64, tpu.core_type = #tpu.core_type<tc>, window_params = [{transform_indices = @transform_0, window_bounds = array<i64: 64, 16>}, {pipeline_mode = #tpu.pipeline_mode<synchronous>, transform_indices = @transform_1, window_bounds = array<i64: 16, 128>}, {pipeline_mode = #tpu.pipeline_mode<synchronous>, transform_indices = @transform_2, window_bounds = array<i64: 1, 128>}, {pipeline_mode = #tpu.pipeline_mode<synchronous>, transform_indices = @transform_3, window_bounds = array<i64: 128, 128>}, {pipeline_mode = #tpu.pipeline_mode<synchronous>, transform_indices = @transform_4, window_bounds = array<i64: 1, 128>}, {pipeline_mode = #tpu.pipeline_mode<synchronous>, transform_indices = @transform_5, window_bounds = array<i64: 128, 8>}, {pipeline_mode = #tpu.pipeline_mode<synchronous>, transform_indices = @transform_6, window_bounds = array<i64: 1, 8>}, {transform_indices = @transform_7, window_bounds = array<i64: 64, 8>}]} {
    %c0 = arith.constant 0 : index
    %c0_0 = arith.constant 0 : index
    %0 = vector.load %arg1[%c0, %c0_0] : memref<64x16xf32, #tpu.memory_space<vmem>>, vector<64x16xf32>
    %c0_1 = arith.constant 0 : index
    %c0_2 = arith.constant 0 : index
    %1 = vector.load %arg2[%c0_1, %c0_2] : memref<16x128xf32, #tpu.memory_space<vmem>>, vector<16x128xf32>
    %c0_3 = arith.constant 0 : index
    %c0_4 = arith.constant 0 : index
    %2 = vector.load %arg3[%c0_3, %c0_4] : memref<1x128xf32, #tpu.memory_space<vmem>>, vector<1x128xf32>
    %cst = arith.constant dense<0.000000e+00> : vector<64x128xf32>
    %3 = tpu.matmul %0, %1, %cst {dimension_numbers = #tpu.dot_dimension_numbers<[1], [0], [0], [1], [0, 0, 1, 1], [], []>} : vector<64x16xf32>, vector<16x128xf32>, vector<64x128xf32> -> vector<64x128xf32>
    %4 = vector.broadcast %2 : vector<1x128xf32> to vector<64x128xf32>
    %5 = arith.addf %3, %4 : vector<64x128xf32>
    %cst_5 = arith.constant 0.000000e+00 : f32
    %6 = vector.broadcast %cst_5 : f32 to vector<64x128xf32>
    %7 = arith.cmpf oge, %5, %6 : vector<64x128xf32>
    %cst_6 = arith.constant 2.000000e-01 : f32
    %8 = vector.broadcast %cst_6 : f32 to vector<64x128xf32>
    %9 = arith.mulf %8, %5 : vector<64x128xf32>
    %10 = arith.select %7, %5, %9 : vector<64x128xi1>, vector<64x128xf32>
    %c0_7 = arith.constant 0 : index
    %c0_8 = arith.constant 0 : index
    %11 = vector.load %arg4[%c0_7, %c0_8] : memref<128x128xf32, #tpu.memory_space<vmem>>, vector<128x128xf32>
    %c0_9 = arith.constant 0 : index
    %c0_10 = arith.constant 0 : index
    %12 = vector.load %arg5[%c0_9, %c0_10] : memref<1x128xf32, #tpu.memory_space<vmem>>, vector<1x128xf32>
    %cst_11 = arith.constant dense<0.000000e+00> : vector<64x128xf32>
    %13 = tpu.matmul %10, %11, %cst_11 {dimension_numbers = #tpu.dot_dimension_numbers<[1], [0], [0], [1], [0, 0, 1, 1], [], []>} : vector<64x128xf32>, vector<128x128xf32>, vector<64x128xf32> -> vector<64x128xf32>
    %14 = vector.broadcast %12 : vector<1x128xf32> to vector<64x128xf32>
    %15 = arith.addf %13, %14 : vector<64x128xf32>
    %cst_12 = arith.constant 0.000000e+00 : f32
    %16 = vector.broadcast %cst_12 : f32 to vector<64x128xf32>
    %17 = arith.cmpf oge, %15, %16 : vector<64x128xf32>
    %cst_13 = arith.constant 2.000000e-01 : f32
    %18 = vector.broadcast %cst_13 : f32 to vector<64x128xf32>
    %19 = arith.mulf %18, %15 : vector<64x128xf32>
    %20 = arith.select %17, %15, %19 : vector<64x128xi1>, vector<64x128xf32>
    %c0_14 = arith.constant 0 : index
    %c0_15 = arith.constant 0 : index
    %21 = vector.load %arg6[%c0_14, %c0_15] : memref<128x8xf32, #tpu.memory_space<vmem>>, vector<128x8xf32>
    %c0_16 = arith.constant 0 : index
    %c0_17 = arith.constant 0 : index
    %22 = vector.load %arg7[%c0_16, %c0_17] : memref<1x8xf32, #tpu.memory_space<vmem>>, vector<1x8xf32>
    %cst_18 = arith.constant dense<0.000000e+00> : vector<64x8xf32>
    %23 = tpu.matmul %20, %21, %cst_18 {dimension_numbers = #tpu.dot_dimension_numbers<[1], [0], [0], [1], [0, 0, 1, 1], [], []>} : vector<64x128xf32>, vector<128x8xf32>, vector<64x8xf32> -> vector<64x8xf32>
    %24 = vector.broadcast %22 : vector<1x8xf32> to vector<64x8xf32>
    %25 = arith.addf %23, %24 : vector<64x8xf32>
    %c0_19 = arith.constant 0 : index
    %c0_20 = arith.constant 0 : index
    %26 = vector.load %arg8[%c0_19, %c0_20] : memref<64x8xf32, #tpu.memory_space<vmem>>, vector<64x8xf32>
    tpu.vector_store %arg8[%c0_19, %c0_20], %25 {strides = array<i32>} : memref<64x8xf32, #tpu.memory_space<vmem>>, vector<64x8xf32>,
    return
  }
  func.func @transform_0(%arg0: i32) -> (i32, i32) {
    %c0_i32 = arith.constant 0 : i32
    %c0_i32_0 = arith.constant 0 : i32
    return %arg0, %c0_i32 : i32, i32
  }
  func.func @transform_1(%arg0: i32) -> (i32, i32) {
    %c0_i32 = arith.constant 0 : i32
    %c0_i32_0 = arith.constant 0 : i32
    %c0_i32_1 = arith.constant 0 : i32
    return %c0_i32, %c0_i32_0 : i32, i32
  }
  func.func @transform_2(%arg0: i32) -> (i32, i32) {
    %c0_i32 = arith.constant 0 : i32
    %c0_i32_0 = arith.constant 0 : i32
    %c0_i32_1 = arith.constant 0 : i32
    return %c0_i32, %c0_i32_0 : i32, i32
  }
  func.func @transform_3(%arg0: i32) -> (i32, i32) {
    %c0_i32 = arith.constant 0 : i32
    %c0_i32_0 = arith.constant 0 : i32
    %c0_i32_1 = arith.constant 0 : i32
    return %c0_i32, %c0_i32_0 : i32, i32
  }
  func.func @transform_4(%arg0: i32) -> (i32, i32) {
    %c0_i32 = arith.constant 0 : i32
    %c0_i32_0 = arith.constant 0 : i32
    %c0_i32_1 = arith.constant 0 : i32
    return %c0_i32, %c0_i32_0 : i32, i32
  }
  func.func @transform_5(%arg0: i32) -> (i32, i32) {
    %c0_i32 = arith.constant 0 : i32
    %c0_i32_0 = arith.constant 0 : i32
    %c0_i32_1 = arith.constant 0 : i32
    return %c0_i32, %c0_i32_0 : i32, i32
  }
  func.func @transform_6(%arg0: i32) -> (i32, i32) {
    %c0_i32 = arith.constant 0 : i32
    %c0_i32_0 = arith.constant 0 : i32
    %c0_i32_1 = arith.constant 0 : i32
    return %c0_i32, %c0_i32_0 : i32, i32
  }
  func.func @transform_7(%arg0: i32) -> (i32, i32) {
    %c0_i32 = arith.constant 0 : i32
    %c0_i32_0 = arith.constant 0 : i32
    return %arg0, %c0_i32 : i32, i32
  }
}

module attributes {stable_mosaic.version = 11 : i64} {
  func.func @kernel(%arg0: i32, %arg1: memref<64x16xf32, #tpu.memory_space<vmem>>, %arg2: memref<16x128xf32, #tpu.memory_space<vmem>>, %arg3: memref<1x128xf32, #tpu.memory_space<vmem>>, %arg4: memref<128x128xf32, #tpu.memory_space<vmem>>, %arg5: memref<1x128xf32, #tpu.memory_space<vmem>>, %arg6: memref<128x8xf32, #tpu.memory_space<vmem>>, %arg7: memref<1x8xf32, #tpu.memory_space<vmem>>, %arg8: memref<64x8xf32, #tpu.memory_space<vmem>>) attributes {dimension_semantics = [#tpu.dimension_semantics<parallel>], iteration_bounds = array<i64: 4>, scalar_prefetch = 0 : i64, scratch_operands = 0 : i64, tpu.core_type = #tpu.core_type<tc>, window_params = [{transform_indices = @transform_0, window_bounds = array<i64: 64, 16>}, {pipeline_mode = #tpu.pipeline_mode<synchronous>, transform_indices = @transform_1, window_bounds = array<i64: 16, 128>}, {pipeline_mode = #tpu.pipeline_mode<synchronous>, transform_indices = @transform_2, window_bounds = array<i64: 1, 128>}, {pipeline_mode = #tpu.pipeline_mode<synchronous>, transform_indices = @transform_3, window_bounds = array<i64: 128, 128>}, {pipeline_mode = #tpu.pipeline_mode<synchronous>, transform_indices = @transform_4, window_bounds = array<i64: 1, 128>}, {pipeline_mode = #tpu.pipeline_mode<synchronous>, transform_indices = @transform_5, window_bounds = array<i64: 128, 8>}, {pipeline_mode = #tpu.pipeline_mode<synchronous>, transform_indices = @transform_6, window_bounds = array<i64: 1, 8>}, {transform_indices = @transform_7, window_bounds = array<i64: 64, 8>}]} {
    %c0 = arith.constant 0 : index
    %c0_0 = arith.constant 0 : index
    %0 = vector.load %arg1[%c0, %c0_0] : memref<64x16xf32, #tpu.memory_space<vmem>>, vector<64x16xf32>
    %c0_1 = arith.constant 0 : index
    %c0_2 = arith.constant 0 : index
    %1 = vector.load %arg2[%c0_1, %c0_2] : memref<16x128xf32, #tpu.memory_space<vmem>>, vector<16x128xf32>
    %c0_3 = arith.constant 0 : index
    %c0_4 = arith.constant 0 : index
    %2 = vector.load %arg3[%c0_3, %c0_4] : memref<1x128xf32, #tpu.memory_space<vmem>>, vector<1x128xf32>
    %cst = arith.constant dense<0.000000e+00> : vector<64x128xf32>
    %3 = tpu.matmul %0, %1, %cst {dimension_numbers = #tpu.dot_dimension_numbers<[1], [0], [0], [1], [0, 0, 1, 1], [], []>} : vector<64x16xf32>, vector<16x128xf32>, vector<64x128xf32> -> vector<64x128xf32>
    %4 = vector.broadcast %2 : vector<1x128xf32> to vector<64x128xf32>
    %5 = arith.addf %3, %4 : vector<64x128xf32>
    %cst_5 = arith.constant 0.000000e+00 : f32
    %6 = vector.broadcast %cst_5 : f32 to vector<64x128xf32>
    %7 = arith.cmpf oge, %5, %6 : vector<64x128xf32>
    %cst_6 = arith.constant 2.000000e-01 : f32
    %8 = vector.broadcast %cst_6 : f32 to vector<64x128xf32>
    %9 = arith.mulf %8, %5 : vector<64x128xf32>
    %10 = arith.select %7, %5, %9 : vector<64x128xi1>, vector<64x128xf32>
    %c0_7 = arith.constant 0 : index
    %c0_8 = arith.constant 0 : index
    %11 = vector.load %arg4[%c0_7, %c0_8] : memref<128x128xf32, #tpu.memory_space<vmem>>, vector<128x128xf32>
    %c0_9 = arith.constant 0 : index
    %c0_10 = arith.constant 0 : index
    %12 = vector.load %arg5[%c0_9, %c0_10] : memref<1x128xf32, #tpu.memory_space<vmem>>, vector<1x128xf32>
    %cst_11 = arith.constant dense<0.000000e+00> : vector<64x128xf32>
    %13 = tpu.matmul %10, %11, %cst_11 {dimension_numbers = #tpu.dot_dimension_numbers<[1], [0], [0], [1], [0, 0, 1, 1], [], []>} : vector<64x128xf32>, vector<128x128xf32>, vector<64x128xf32> -> vector<64x128xf32>
    %14 = vector.broadcast %12 : vector<1x128xf32> to vector<64x128xf32>
    %15 = arith.addf %13, %14 : vector<64x128xf32>
    %cst_12 = arith.constant 0.000000e+00 : f32
    %16 = vector.broadcast %cst_12 : f32 to vector<64x128xf32>
    %17 = arith.cmpf oge, %15, %16 : vector<64x128xf32>
    %cst_13 = arith.constant 2.000000e-01 : f32
    %18 = vector.broadcast %cst_13 : f32 to vector<64x128xf32>
    %19 = arith.mulf %18, %15 : vector<64x128xf32>
    %20 = arith.select %17, %15, %19 : vector<64x128xi1>, vector<64x128xf32>
    %c0_14 = arith.constant 0 : index
    %c0_15 = arith.constant 0 : index
    %21 = vector.load %arg6[%c0_14, %c0_15] : memref<128x8xf32, #tpu.memory_space<vmem>>, vector<128x8xf32>
    %c0_16 = arith.constant 0 : index
    %c0_17 = arith.constant 0 : index
    %22 = vector.load %arg7[%c0_16, %c0_17] : memref<1x8xf32, #tpu.memory_space<vmem>>, vector<1x8xf32>
    %cst_18 = arith.constant dense<0.000000e+00> : vector<64x8xf32>
    %23 = tpu.matmul %20, %21, %cst_18 {dimension_numbers = #tpu.dot_dimension_numbers<[1], [0], [0], [1], [0, 0, 1, 1], [], []>} : vector<64x128xf32>, vector<128x8xf32>, vector<64x8xf32> -> vector<64x8xf32>
    %24 = vector.broadcast %22 : vector<1x8xf32> to vector<64x8xf32>
    %25 = arith.addf %23, %24 : vector<64x8xf32>
    %c0_19 = arith.constant 0 : index
    %c0_20 = arith.constant 0 : index
    %26 = vector.load %arg8[%c0_19, %c0_20] : memref<64x8xf32, #tpu.memory_space<vmem>>, vector<64x8xf32>
    tpu.vector_store %arg8[%c0_19, %c0_20], %25 {strides = array<i32>} : memref<64x8xf32, #tpu.memory_space<vmem>>, vector<64x8xf32>,
    return
  }
  func.func @transform_0(%arg0: i32) -> (i32, i32) {
    %c0_i32 = arith.constant 0 : i32
    %c0_i32_0 = arith.constant 0 : i32
    return %arg0, %c0_i32 : i32, i32
  }
  func.func @transform_1(%arg0: i32) -> (i32, i32) {
    %c0_i32 = arith.constant 0 : i32
    %c0_i32_0 = arith.constant 0 : i32
    %c0_i32_1 = arith.constant 0 : i32
    return %c0_i32, %c0_i32_0 : i32, i32
  }
  func.func @transform_2(%arg0: i32) -> (i32, i32) {
    %c0_i32 = arith.constant 0 : i32
    %c0_i32_0 = arith.constant 0 : i32
    %c0_i32_1 = arith.constant 0 : i32
    return %c0_i32, %c0_i32_0 : i32, i32
  }
  func.func @transform_3(%arg0: i32) -> (i32, i32) {
    %c0_i32 = arith.constant 0 : i32
    %c0_i32_0 = arith.constant 0 : i32
    %c0_i32_1 = arith.constant 0 : i32
    return %c0_i32, %c0_i32_0 : i32, i32
  }
  func.func @transform_4(%arg0: i32) -> (i32, i32) {
    %c0_i32 = arith.constant 0 : i32
    %c0_i32_0 = arith.constant 0 : i32
    %c0_i32_1 = arith.constant 0 : i32
    return %c0_i32, %c0_i32_0 : i32, i32
  }
  func.func @transform_5(%arg0: i32) -> (i32, i32) {
    %c0_i32 = arith.constant 0 : i32
    %c0_i32_0 = arith.constant 0 : i32
    %c0_i32_1 = arith.constant 0 : i32
    return %c0_i32, %c0_i32_0 : i32, i32
  }
  func.func @transform_6(%arg0: i32) -> (i32, i32) {
    %c0_i32 = arith.constant 0 : i32
    %c0_i32_0 = arith.constant 0 : i32
    %c0_i32_1 = arith.constant 0 : i32
    return %c0_i32, %c0_i32_0 : i32, i32
  }
  func.func @transform_7(%arg0: i32) -> (i32, i32) {
    %c0_i32 = arith.constant 0 : i32
    %c0_i32_0 = arith.constant 0 : i32
    return %arg0, %c0_i32 : i32, i32
  }
}

</mosaic_0001>

<llo_original>
// kernel: tpu_custom_call.1
$region0: #{tpu_custom_call.1}
  #allocation0 [shape = 'u32[]', space=smem, size = 0x4, offset = 0x4, fixed_abs, tag = 'smem constant byte address 0x4 - core index']
  #allocation1 [shape = 'u32[144,128]{1,0:T(1,128)}', space=vmem, size = 0x12000, scoped, tag = 'internal scratch']
  %s0 = inlined_call_operand.vmem [shape: f32[256,16], index: 0, kind: input, shape index: {}]
  %s1 = inlined_call_operand.vmem [shape: f32[16,128], index: 1, kind: input, shape index: {}]
  %s2 = inlined_call_operand.vmem [shape: f32[1,128], index: 2, kind: input, shape index: {}]
  %s3 = inlined_call_operand.vmem [shape: f32[128,128], index: 3, kind: input, shape index: {}]
  %s4 = inlined_call_operand.vmem [shape: f32[1,128], index: 4, kind: input, shape index: {}]
  %s5 = inlined_call_operand.vmem [shape: f32[128,8], index: 5, kind: input, shape index: {}]
  %s6 = inlined_call_operand.vmem [shape: f32[1,8], index: 6, kind: input, shape index: {}]
  %s7 = inlined_call_operand.vmem [shape: f32[256,8], index: 7, kind: output, shape index: {}]
  %s8 = sld [smem:[#allocation0]]
  $region61: #{tpu_custom_call.1} parent=0
    _
  %s10 = ssub.s32 1, %s8
  %s11 = scalar_select 0, %s10, %s8
  loop: start=0, step=1, limit=6
  $region2: #{tpu_custom_call.1} parent=0 // loop_pre_header
    _
  $region3: #{tpu_custom_call.1} parent=0 // loop_header
    %s13 = sphi 0, %s17
    %p14 = scmp.ge.s32.totalorder %s13, 6
    %s23 = sphi 0, %s25
    %s26 = sphi 0, %s23
    %s27 = sphi 0, %s26
    %s43 = sphi 0, %s27
    %s47 = sphi 0, %s47
    %s49 = sphi 0, %s47
    %s50 = sphi 0, %s49
    %s64 = sphi 0, %s50
    %s68 = sphi 0, %s68
    %s70 = sphi 0, %s68
    %s71 = sphi 0, %s70
    %s85 = sphi 0, %s71
    %s89 = sphi 0, %s89
    %s91 = sphi 0, %s89
    %s92 = sphi 0, %s91
    %s106 = sphi 0, %s92
    %s110 = sphi 0, %s110
    %s112 = sphi 0, %s110
    %s113 = sphi 0, %s112
    %s127 = sphi 0, %s113
    %s131 = sphi 0, %s131
    %s133 = sphi 0, %s131
    %s134 = sphi 0, %s133
    %s148 = sphi 0, %s134
    %s152 = sphi 0, %s152
    %s154 = sphi 0, %s152
    %s155 = sphi 0, %s154
    %s169 = sphi 0, %s155
    %s175 = sphi 0, %s177
    %s178 = sphi 0, %s175
    %s179 = sphi 0, %s178
    %s195 = sphi 0, %s179
  $region4: #{tpu_custom_call.1} parent=0 // loop_header_branch
    %16 = sbr.rel (%p14) target = $region8
  $region5: #{tpu_custom_call.1} parent=0 // loop_body
    %s18 = ssub.s32 %s13, 1
    %s19 = ssub.s32 %s13, 2
    %s20 = sadd.s32 %s13, 1
    %s21 = ssub.s32 %s13, %s20
    %p22 = scmp.eq.s32.totalorder %s21, 0
    %s24 = sadd.s32 %s23, 1
    %s25 = scalar_select %p22, %s23, %s24
    %p28 = pneg %p22
    %p29 = scmp.eq.s32.totalorder %s13, 3
    %p30 = por %p28, %p29
    %p31 = scmp.ne.s32.totalorder %s23, %s26
    %p32 = scmp.eq.s32.totalorder %s13, 0
    %p33 = por %p31, %p32
    %p34 = scmp.ne.s32.totalorder %s23, %s26
    %p35 = scmp.eq.s32.totalorder %s18, 3
    %p36 = por %p34, %p35
    %p37 = scmp.ne.s32.totalorder %s26, %s27
    %p38 = scmp.eq.s32.totalorder %s18, 0
    %p39 = por %p37, %p38
    %p40 = scmp.ne.s32.totalorder %s26, %s27
    %p41 = scmp.eq.s32.totalorder %s19, 3
    %p42 = por %p40, %p41
    %p44 = scmp.ne.s32.totalorder %s27, %s43
    %p45 = scmp.eq.s32.totalorder %s19, 0
    %p46 = por %p44, %p45
    %s48 = sadd.s32 %s47, 1
    %p51 = scmp.eq.s32.totalorder %s13, 3
    %p52 = scmp.ne.s32.totalorder %s47, %s49
    %p53 = scmp.eq.s32.totalorder %s13, 0
    %p54 = por %p52, %p53
    %p55 = scmp.ne.s32.totalorder %s47, %s49
    %p56 = scmp.eq.s32.totalorder %s18, 3
    %p57 = por %p55, %p56
    %p58 = scmp.ne.s32.totalorder %s49, %s50
    %p59 = scmp.eq.s32.totalorder %s18, 0
    %p60 = por %p58, %p59
    %p61 = scmp.ne.s32.totalorder %s49, %s50
    %p62 = scmp.eq.s32.totalorder %s19, 3
    %p63 = por %p61, %p62
    %p65 = scmp.ne.s32.totalorder %s50, %s64
    %p66 = scmp.eq.s32.totalorder %s19, 0
    %p67 = por %p65, %p66
    %s69 = sadd.s32 %s68, 1
    %p72 = scmp.eq.s32.totalorder %s13, 3
    %p73 = scmp.ne.s32.totalorder %s68, %s70
    %p74 = scmp.eq.s32.totalorder %s13, 0
    %p75 = por %p73, %p74
    %p76 = scmp.ne.s32.totalorder %s68, %s70
    %p77 = scmp.eq.s32.totalorder %s18, 3
    %p78 = por %p76, %p77
    %p79 = scmp.ne.s32.totalorder %s70, %s71
    %p80 = scmp.eq.s32.totalorder %s18, 0
    %p81 = por %p79, %p80
    %p82 = scmp.ne.s32.totalorder %s70, %s71
    %p83 = scmp.eq.s32.totalorder %s19, 3
    %p84 = por %p82, %p83
    %p86 = scmp.ne.s32.totalorder %s71, %s85
    %p87 = scmp.eq.s32.totalorder %s19, 0
    %p88 = por %p86, %p87
    %s90 = sadd.s32 %s89, 1
    %p93 = scmp.eq.s32.totalorder %s13, 3
    %p94 = scmp.ne.s32.totalorder %s89, %s91
    %p95 = scmp.eq.s32.totalorder %s13, 0
    %p96 = por %p94, %p95
    %p97 = scmp.ne.s32.totalorder %s89, %s91
    %p98 = scmp.eq.s32.totalorder %s18, 3
    %p99 = por %p97, %p98
    %p100 = scmp.ne.s32.totalorder %s91, %s92
    %p101 = scmp.eq.s32.totalorder %s18, 0
    %p102 = por %p100, %p101
    %p103 = scmp.ne.s32.totalorder %s91, %s92
    %p104 = scmp.eq.s32.totalorder %s19, 3
    %p105 = por %p103, %p104
    %p107 = scmp.ne.s32.totalorder %s92, %s106
    %p108 = scmp.eq.s32.totalorder %s19, 0
    %p109 = por %p107, %p108
    %s111 = sadd.s32 %s110, 1
    %p114 = scmp.eq.s32.totalorder %s13, 3
    %p115 = scmp.ne.s32.totalorder %s110, %s112
    %p116 = scmp.eq.s32.totalorder %s13, 0
    %p117 = por %p115, %p116
    %p118 = scmp.ne.s32.totalorder %s110, %s112
    %p119 = scmp.eq.s32.totalorder %s18, 3
    %p120 = por %p118, %p119
    %p121 = scmp.ne.s32.totalorder %s112, %s113
    %p122 = scmp.eq.s32.totalorder %s18, 0
    %p123 = por %p121, %p122
    %p124 = scmp.ne.s32.totalorder %s112, %s113
    %p125 = scmp.eq.s32.totalorder %s19, 3
    %p126 = por %p124, %p125
    %p128 = scmp.ne.s32.totalorder %s113, %s127
    %p129 = scmp.eq.s32.totalorder %s19, 0
    %p130 = por %p128, %p129
    %s132 = sadd.s32 %s131, 1
    %p135 = scmp.eq.s32.totalorder %s13, 3
    %p136 = scmp.ne.s32.totalorder %s131, %s133
    %p137 = scmp.eq.s32.totalorder %s13, 0
    %p138 = por %p136, %p137
    %p139 = scmp.ne.s32.totalorder %s131, %s133
    %p140 = scmp.eq.s32.totalorder %s18, 3
    %p141 = por %p139, %p140
    %p142 = scmp.ne.s32.totalorder %s133, %s134
    %p143 = scmp.eq.s32.totalorder %s18, 0
    %p144 = por %p142, %p143
    %p145 = scmp.ne.s32.totalorder %s133, %s134
    %p146 = scmp.eq.s32.totalorder %s19, 3
    %p147 = por %p145, %p146
    %p149 = scmp.ne.s32.totalorder %s134, %s148
    %p150 = scmp.eq.s32.totalorder %s19, 0
    %p151 = por %p149, %p150
    %s153 = sadd.s32 %s152, 1
    %p156 = scmp.eq.s32.totalorder %s13, 3
    %p157 = scmp.ne.s32.totalorder %s152, %s154
    %p158 = scmp.eq.s32.totalorder %s13, 0
    %p159 = por %p157, %p158
    %p160 = scmp.ne.s32.totalorder %s152, %s154
    %p161 = scmp.eq.s32.totalorder %s18, 3
    %p162 = por %p160, %p161
    %p163 = scmp.ne.s32.totalorder %s154, %s155
    %p164 = scmp.eq.s32.totalorder %s18, 0
    %p165 = por %p163, %p164
    %p166 = scmp.ne.s32.totalorder %s154, %s155
    %p167 = scmp.eq.s32.totalorder %s19, 3
    %p168 = por %p166, %p167
    %p170 = scmp.ne.s32.totalorder %s155, %s169
    %p171 = scmp.eq.s32.totalorder %s19, 0
    %p172 = por %p170, %p171
    %s173 = ssub.s32 %s13, %s20
    %p174 = scmp.eq.s32.totalorder %s173, 0
    %s176 = sadd.s32 %s175, 1
    %s177 = scalar_select %p174, %s175, %s176
    %p180 = pneg %p174
    %p181 = scmp.eq.s32.totalorder %s13, 3
    %p182 = por %p180, %p181
    %p183 = scmp.ne.s32.totalorder %s175, %s178
    %p184 = scmp.eq.s32.totalorder %s13, 0
    %p185 = por %p183, %p184
    %p186 = scmp.ne.s32.totalorder %s175, %s178
    %p187 = scmp.eq.s32.totalorder %s18, 3
    %p188 = por %p186, %p187
    %p189 = scmp.ne.s32.totalorder %s178, %s179
    %p190 = scmp.eq.s32.totalorder %s18, 0
    %p191 = por %p189, %p190
    %p192 = scmp.ne.s32.totalorder %s178, %s179
    %p193 = scmp.eq.s32.totalorder %s19, 3
    %p194 = por %p192, %p193
    %p196 = scmp.ne.s32.totalorder %s179, %s195
    %p197 = scmp.eq.s32.totalorder %s19, 0
    %p198 = por %p196, %p197
    %p199 = scmp.le.s32.totalorder 1, %s13
    %p200 = scmp.lt.s32.totalorder %s13, 5
    %p201 = pnand %p199, %p200
    %p202 = pneg %p201
    // Predicated region
    $region9: #{tpu_custom_call.1} parent=5 // pred_check
      _
    $region10: #{tpu_custom_call.1} parent=5 // pred_check_branch
      %204 = sbr.rel (%p201) target = $region12
    $region11: #{tpu_custom_call.1} parent=5 // pred_region
      %s205 = ssub.s32 %s13, 1
      // Predicated region
      $region13: #{tpu_custom_call.1} parent=11 // pred_check
        %p206 = pneg %p60
      $region14: #{tpu_custom_call.1} parent=11 // pred_check_branch
        %208 = sbr.rel (%p206) target = $region16
      $region15: #{tpu_custom_call.1} parent=11 // pred_region
        _
      $region16: #{tpu_custom_call.1} parent=11 // pred_fallthru
        _
      // Predicated region
      $region17: #{tpu_custom_call.1} parent=11 // pred_check
        %p209 = pneg %p81
      $region18: #{tpu_custom_call.1} parent=11 // pred_check_branch
        %211 = sbr.rel (%p209) target = $region20
      $region19: #{tpu_custom_call.1} parent=11 // pred_region
        _
      $region20: #{tpu_custom_call.1} parent=11 // pred_fallthru
        _
      // Predicated region
      $region21: #{tpu_custom_call.1} parent=11 // pred_check
        %p212 = pneg %p102
      $region22: #{tpu_custom_call.1} parent=11 // pred_check_branch
        %214 = sbr.rel (%p212) target = $region24
      $region23: #{tpu_custom_call.1} parent=11 // pred_region
        _
      $region24: #{tpu_custom_call.1} parent=11 // pred_fallthru
        _
      // Predicated region
      $region25: #{tpu_custom_call.1} parent=11 // pred_check
        %p215 = pneg %p123
      $region26: #{tpu_custom_call.1} parent=11 // pred_check_branch
        %217 = sbr.rel (%p215) target = $region28
      $region27: #{tpu_custom_call.1} parent=11 // pred_region
        _
      $region28: #{tpu_custom_call.1} parent=11 // pred_fallthru
        _
      // Predicated region
      $region29: #{tpu_custom_call.1} parent=11 // pred_check
        %p218 = pneg %p144
      $region30: #{tpu_custom_call.1} parent=11 // pred_check_branch
        %220 = sbr.rel (%p218) target = $region32
      $region31: #{tpu_custom_call.1} parent=11 // pred_region
        _
      $region32: #{tpu_custom_call.1} parent=11 // pred_fallthru
        _
      // Predicated region
      $region33: #{tpu_custom_call.1} parent=11 // pred_check
        %p221 = pneg %p165
      $region34: #{tpu_custom_call.1} parent=11 // pred_check_branch
        %223 = sbr.rel (%p221) target = $region36
      $region35: #{tpu_custom_call.1} parent=11 // pred_region
        _
      $region36: #{tpu_custom_call.1} parent=11 // pred_fallthru
        _
    $region12: #{tpu_custom_call.1} parent=5 // pred_fallthru
      _
    %p224 = scmp.lt.s32.totalorder %s13, 4
    // Predicated region
    $region37: #{tpu_custom_call.1} parent=5 // pred_check
      %p225 = pneg %p224
    $region38: #{tpu_custom_call.1} parent=5 // pred_check_branch
      %227 = sbr.rel (%p225) target = $region40
    $region39: #{tpu_custom_call.1} parent=5 // pred_region
      // Predicated region
      $region41: #{tpu_custom_call.1} parent=39 // pred_check
        %p228 = pneg %p33
      $region42: #{tpu_custom_call.1} parent=39 // pred_check_branch
        %230 = sbr.rel (%p228) target = $region44
      $region43: #{tpu_custom_call.1} parent=39 // pred_region
        %s231 = smul.u32 8, %s13
        %p232 = scmp.lt.s32.totalorder %s231, 31
        %s233 = scalar_select %p232, %s231, 31
        %s234 = smul.addr %s233, 8
        %s235 = scalar_lea.vmem %s0, %s234
        %s236 = smul.u32 8, %s13
      $region44: #{tpu_custom_call.1} parent=39 // pred_fallthru
        _
    $region40: #{tpu_custom_call.1} parent=5 // pred_fallthru
      _
    %p237 = scmp.le.s32.totalorder 1, %s13
    %p238 = scmp.lt.s32.totalorder %s13, 5
    %p239 = pnand %p237, %p238
    %p240 = pneg %p239
    // Predicated region
    $region45: #{tpu_custom_call.1} parent=5 // pred_check
      _
    $region46: #{tpu_custom_call.1} parent=5 // pred_check_branch
      %242 = sbr.rel (%p239) target = $region48
    $region47: #{tpu_custom_call.1} parent=5 // pred_region
      %s243 = ssub.s32 %s13, 1
      %s244 = smul.u32 8, %s18
      %p245 = scmp.lt.s32.totalorder %s244, 31
      %s246 = scalar_select %p245, %s244, 31
      %s247 = smul.addr %s246, 8
      %s248 = scalar_lea.vmem %s0, %s247
      %p249 = pneg %p39
      %p250 = pneg %p36
      %p251 = pneg %p60
      %p252 = pneg %p57
      %p253 = pneg %p81
      %p254 = pneg %p78
      %p255 = pneg %p102
      %p256 = pneg %p99
      %p257 = pneg %p123
      %p258 = pneg %p120
      %p259 = pneg %p144
      %p260 = pneg %p141
      %p261 = pneg %p165
      %p262 = pneg %p162
      %p263 = pneg %p191
      %p264 = pneg %p188
      %s265 = smul.u32 8, %s18
      %p266 = scmp.lt.s32.totalorder %s265, 31
      %s267 = scalar_select %p266, %s265, 31
      %s268 = smul.addr %s267, 8
      %s269 = scalar_lea.vmem %s7, %s268
      %s270 = smul.u32 8, %s18
      %p271 = scmp.lt.s32.totalorder %s270, 31
      %s272 = scalar_select %p271, %s270, 31
      %s273 = smul.addr %s272, 8
      %s274 = scalar_lea.vmem %s0, %s273
      %s275 = smul.u32 8, %s18
      %s276 = smul.u32 8, %s18
      %p277 = scmp.lt.s32.totalorder %s276, 31
      %s278 = scalar_select %p277, %s276, 31
      %s279 = smul.addr %s278, 8
      %s280 = scalar_lea.vmem %s7, %s279
      %s281 = smul.u32 8, %s18
      %v282 = vld [vmem:[%s274] sm:$0xff]
      %v283 = vld [vmem:[%s274 + $0x8] sm:$0xff]
      %v284 = vld [vmem:[%s274 + $0x10] sm:$0xff]
      %v285 = vld [vmem:[%s274 + $0x18] sm:$0xff]
      %v286 = vld [vmem:[%s274 + $0x20] sm:$0xff]
      %v287 = vld [vmem:[%s274 + $0x28] sm:$0xff]
      %v288 = vld [vmem:[%s274 + $0x30] sm:$0xff]
      %v289 = vld [vmem:[%s274 + $0x38] sm:$0xff]
      %v290 = vld [vmem:[%s1] sm:$0xff]
      %v291 = vld [vmem:[%s1 + $0x8] sm:$0xff]
      %v292 = vld [vmem:[%s2] sm:$0x1]
      %v294 = vlaneseq
      %v295 = vshrl.u32 %v294, 7
      %v296 = vsub.s32 0, %v295
      %v297 = vrot.slane %v292, %v296
      %vm299 = vcmask 130048
      %v301 = vsel %vm299, %v282, 0
      %v304 = vsel %vm299, %v283, 0
      %v307 = vsel %vm299, %v284, 0
      %v310 = vsel %vm299, %v285, 0
      %v313 = vsel %vm299, %v286, 0
      %v316 = vsel %vm299, %v287, 0
      %v319 = vsel %vm299, %v288, 0
      %v322 = vsel %vm299, %v289, 0
      %324 = vmatprep.subr.mxu0 0.0
      %325 = vmatpush1.msra.mxu0 %v290
      %326 = vmatprep.subr.mxu0 0.0
      %327 = vmatpush1.msra.mxu0 %v291
      %328 = vmatprep.subr.mxu0 0.0
      %329 = vmatpush1.msra.mxu0 0.0
      %330 = vmatprep.subr.mxu0 0.0
      %331 = vmatpush1.msra.mxu0 0.0
      %332 = vmatprep.subr.mxu0 0.0
      %333 = vmatpush1.msra.mxu0 0.0
      %334 = vmatprep.subr.mxu0 0.0
      %335 = vmatpush1.msra.mxu0 0.0
      %336 = vmatprep.subr.mxu0 0.0
      %337 = vmatpush1.msra.mxu0 0.0
      %338 = vmatprep.subr.mxu0 0.0
      %339 = vmatpush1.msra.mxu0 0.0
      %340 = vmatprep.subr.mxu0 0.0
      %341 = vmatpush1.msra.mxu0 0.0
      %342 = vmatprep.subr.mxu0 0.0
      %343 = vmatpush1.msra.mxu0 0.0
      %344 = vmatprep.subr.mxu0 0.0
      %345 = vmatpush1.msra.mxu0 0.0
      %346 = vmatprep.subr.mxu0 0.0
      %347 = vmatpush1.msra.mxu0 0.0
      %348 = vmatprep.subr.mxu0 0.0
      %349 = vmatpush1.msra.mxu0 0.0
      %350 = vmatprep.subr.mxu0 0.0
      %351 = vmatpush1.msra.mxu0 0.0
      %352 = vmatprep.subr.mxu0 0.0
      %353 = vmatpush1.msra.mxu0 0.0
      %354 = vmatprep.subr.mxu0 0.0
      %355 = vmatpush1.msra.mxu0 0.0
      %356 = vmatprep.subr.mxu0 0.0
      %357 = vmatpush1.msra.mxu0 0.0
      %358 = vmatprep.subr.mxu0 0.0
      %359 = vmatpush1.msra.mxu0 0.0
      %360 = vmatprep.subr.mxu0 0.0
      %361 = vmatpush1.msra.mxu0 0.0
      %362 = vmatprep.subr.mxu0 0.0
      %363 = vmatpush1.msra.mxu0 0.0
      %364 = vmatprep.subr.mxu0 0.0
      %365 = vmatpush1.msra.mxu0 0.0
      %366 = vmatprep.subr.mxu0 0.0
      %367 = vmatpush1.msra.mxu0 0.0
      %368 = vmatprep.subr.mxu0 0.0
      %369 = vmatpush1.msra.mxu0 0.0
      %370 = vmatprep.subr.mxu0 0.0
      %371 = vmatpush1.msra.mxu0 0.0
      %372 = vmatprep.subr.mxu0 0.0
      %373 = vmatpush1.msra.mxu0 0.0
      %374 = vmatprep.subr.mxu0 0.0
      %375 = vmatpush1.msra.mxu0 0.0
      %376 = vmatprep.subr.mxu0 0.0
      %377 = vmatpush1.msra.mxu0 0.0
      %378 = vmatprep.subr.mxu0 0.0
      %379 = vmatpush1.msra.mxu0 0.0
      %380 = vmatprep.subr.mxu0 0.0
      %381 = vmatpush1.msra.mxu0 0.0
      %382 = vmatprep.subr.mxu0 0.0
      %383 = vmatpush1.msra.mxu0 0.0
      %384 = vmatprep.subr.mxu0 0.0
      %385 = vmatpush1.msra.mxu0 0.0
      %386 = vmatprep.subr.mxu0 0.0
      %387 = vmatpush1.msra.mxu0 0.0
      %388 = vmatprep.mubr.f32.mxu0 0.0
      %389 = vmatmul.mubr.f32.gmra.mrb[0].mxu0 %v301
      %v390 = vpop.f32.mrb[0].mxu0
      %v391 = vadd.f32 %v297, %v390
      %v392 = vpop.f32.mrb[0].mxu0
      %393 = vmatprep.mubr.f32.mxu0 0.0
      %394 = vmatmul.mubr.f32.gmra.mrb[0].mxu0 %v304
      %v395 = vpop.f32.mrb[0].mxu0
      %v396 = vadd.f32 %v297, %v395
      %v397 = vpop.f32.mrb[0].mxu0
      %398 = vmatprep.mubr.f32.mxu0 0.0
      %399 = vmatmul.mubr.f32.gmra.mrb[0].mxu0 %v307
      %v400 = vpop.f32.mrb[0].mxu0
      %v401 = vadd.f32 %v297, %v400
      %v402 = vpop.f32.mrb[0].mxu0
      %403 = vmatprep.mubr.f32.mxu0 0.0
      %404 = vmatmul.mubr.f32.gmra.mrb[0].mxu0 %v310
      %v405 = vpop.f32.mrb[0].mxu0
      %v406 = vadd.f32 %v297, %v405
      %v407 = vpop.f32.mrb[0].mxu0
      %408 = vmatprep.mubr.f32.mxu0 0.0
      %409 = vmatmul.mubr.f32.gmra.mrb[0].mxu0 %v313
      %v410 = vpop.f32.mrb[0].mxu0
      %v411 = vadd.f32 %v297, %v410
      %v412 = vpop.f32.mrb[0].mxu0
      %413 = vmatprep.mubr.f32.mxu0 0.0
      %414 = vmatmul.mubr.f32.gmra.mrb[0].mxu0 %v316
      %v415 = vpop.f32.mrb[0].mxu0
      %v416 = vadd.f32 %v297, %v415
      %v417 = vpop.f32.mrb[0].mxu0
      %418 = vmatprep.mubr.f32.mxu0 0.0
      %419 = vmatmul.mubr.f32.gmra.mrb[0].mxu0 %v319
      %v420 = vpop.f32.mrb[0].mxu0
      %v421 = vadd.f32 %v297, %v420
      %v422 = vpop.f32.mrb[0].mxu0
      %423 = vmatprep.mubr.f32.mxu0 0.0
      %424 = vmatmul.mubr.f32.gmra.mrb[0].mxu0 %v322
      %v425 = vpop.f32.mrb[0].mxu0
      %v426 = vadd.f32 %v297, %v425
      %v427 = vpop.f32.mrb[0].mxu0
      %428 = vdwg.mxu0
      %vm429 = vcmp.ge.f32.partialorder %v391, 0.0
      %vm430 = vcmp.ge.f32.partialorder %v396, 0.0
      %vm431 = vcmp.ge.f32.partialorder %v401, 0.0
      %vm432 = vcmp.ge.f32.partialorder %v406, 0.0
      %vm433 = vcmp.ge.f32.partialorder %v411, 0.0
      %vm434 = vcmp.ge.f32.partialorder %v416, 0.0
      %vm435 = vcmp.ge.f32.partialorder %v421, 0.0
      %vm436 = vcmp.ge.f32.partialorder %v426, 0.0
      %v437 = vmul.f32 %v391, 0.2
      %v438 = vmul.f32 %v396, 0.2
      %v439 = vmul.f32 %v401, 0.2
      %v440 = vmul.f32 %v406, 0.2
      %v441 = vmul.f32 %v411, 0.2
      %v442 = vmul.f32 %v416, 0.2
      %v443 = vmul.f32 %v421, 0.2
      %v444 = vmul.f32 %v426, 0.2
      %v445 = vsel %vm429, %v391, %v437
      %v446 = vsel %vm430, %v396, %v438
      %v447 = vsel %vm431, %v401, %v439
      %v448 = vsel %vm432, %v406, %v440
      %v449 = vsel %vm433, %v411, %v441
      %v450 = vsel %vm434, %v416, %v442
      %v451 = vsel %vm435, %v421, %v443
      %v452 = vsel %vm436, %v426, %v444
      %v453 = vld [vmem:[%s3] sm:$0xff]
      %v454 = vld [vmem:[%s3 + $0x8] sm:$0xff]
      %v455 = vld [vmem:[%s3 + $0x10] sm:$0xff]
      %v456 = vld [vmem:[%s3 + $0x18] sm:$0xff]
      %v457 = vld [vmem:[%s3 + $0x20] sm:$0xff]
      %v458 = vld [vmem:[%s3 + $0x28] sm:$0xff]
      %v459 = vld [vmem:[%s3 + $0x30] sm:$0xff]
      %v460 = vld [vmem:[%s3 + $0x38] sm:$0xff]
      %v461 = vld [vmem:[%s3 + $0x40] sm:$0xff]
      %v462 = vld [vmem:[%s3 + $0x48] sm:$0xff]
      %v463 = vld [vmem:[%s3 + $0x50] sm:$0xff]
      %v464 = vld [vmem:[%s3 + $0x58] sm:$0xff]
      %v465 = vld [vmem:[%s3 + $0x60] sm:$0xff]
      %v466 = vld [vmem:[%s3 + $0x68] sm:$0xff]
      %v467 = vld [vmem:[%s3 + $0x70] sm:$0xff]
      %v468 = vld [vmem:[%s3 + $0x78] sm:$0xff]
      %v469 = vld [vmem:[%s4] sm:$0x1]
      %v471 = vlaneseq
      %v472 = vshrl.u32 %v471, 7
      %v473 = vsub.s32 0, %v472
      %v474 = vrot.slane %v469, %v473
      %476 = vmatprep.subr.mxu0 0.0
      %477 = vmatpush1.msra.mxu0 %v453
      %478 = vmatprep.subr.mxu0 0.0
      %479 = vmatpush1.msra.mxu0 %v454
      %480 = vmatprep.subr.mxu0 0.0
      %481 = vmatpush1.msra.mxu0 %v455
      %482 = vmatprep.subr.mxu0 0.0
      %483 = vmatpush1.msra.mxu0 %v456
      %484 = vmatprep.subr.mxu0 0.0
      %485 = vmatpush1.msra.mxu0 %v457
      %486 = vmatprep.subr.mxu0 0.0
      %487 = vmatpush1.msra.mxu0 %v458
      %488 = vmatprep.subr.mxu0 0.0
      %489 = vmatpush1.msra.mxu0 %v459
      %490 = vmatprep.subr.mxu0 0.0
      %491 = vmatpush1.msra.mxu0 %v460
      %492 = vmatprep.subr.mxu0 0.0
      %493 = vmatpush1.msra.mxu0 %v461
      %494 = vmatprep.subr.mxu0 0.0
      %495 = vmatpush1.msra.mxu0 %v462
      %496 = vmatprep.subr.mxu0 0.0
      %497 = vmatpush1.msra.mxu0 %v463
      %498 = vmatprep.subr.mxu0 0.0
      %499 = vmatpush1.msra.mxu0 %v464
      %500 = vmatprep.subr.mxu0 0.0
      %501 = vmatpush1.msra.mxu0 %v465
      %502 = vmatprep.subr.mxu0 0.0
      %503 = vmatpush1.msra.mxu0 %v466
      %504 = vmatprep.subr.mxu0 0.0
      %505 = vmatpush1.msra.mxu0 %v467
      %506 = vmatprep.subr.mxu0 0.0
      %507 = vmatpush1.msra.mxu0 %v468
      %508 = vmatprep.subr.mxu0 0.0
      %509 = vmatpush1.msra.mxu0 0.0
      %510 = vmatprep.subr.mxu0 0.0
      %511 = vmatpush1.msra.mxu0 0.0
      %512 = vmatprep.subr.mxu0 0.0
      %513 = vmatpush1.msra.mxu0 0.0
      %514 = vmatprep.subr.mxu0 0.0
      %515 = vmatpush1.msra.mxu0 0.0
      %516 = vmatprep.subr.mxu0 0.0
      %517 = vmatpush1.msra.mxu0 0.0
      %518 = vmatprep.subr.mxu0 0.0
      %519 = vmatpush1.msra.mxu0 0.0
      %520 = vmatprep.subr.mxu0 0.0
      %521 = vmatpush1.msra.mxu0 0.0
      %522 = vmatprep.subr.mxu0 0.0
      %523 = vmatpush1.msra.mxu0 0.0
      %524 = vmatprep.subr.mxu0 0.0
      %525 = vmatpush1.msra.mxu0 0.0
      %526 = vmatprep.subr.mxu0 0.0
      %527 = vmatpush1.msra.mxu0 0.0
      %528 = vmatprep.subr.mxu0 0.0
      %529 = vmatpush1.msra.mxu0 0.0
      %530 = vmatprep.subr.mxu0 0.0
      %531 = vmatpush1.msra.mxu0 0.0
      %532 = vmatprep.subr.mxu0 0.0
      %533 = vmatpush1.msra.mxu0 0.0
      %534 = vmatprep.subr.mxu0 0.0
      %535 = vmatpush1.msra.mxu0 0.0
      %536 = vmatprep.subr.mxu0 0.0
      %537 = vmatpush1.msra.mxu0 0.0
      %538 = vmatprep.subr.mxu0 0.0
      %539 = vmatpush1.msra.mxu0 0.0
      %540 = vmatprep.mubr.f32.mxu0 0.0
      %541 = vmatmul.mubr.f32.gmra.mrb[0].mxu0 %v445
      %v542 = vpop.f32.mrb[0].mxu0
      %v543 = vadd.f32 %v474, %v542
      %v544 = vpop.f32.mrb[0].mxu0
      %545 = vmatprep.mubr.f32.mxu0 0.0
      %546 = vmatmul.mubr.f32.gmra.mrb[0].mxu0 %v446
      %v547 = vpop.f32.mrb[0].mxu0
      %v548 = vadd.f32 %v474, %v547
      %v549 = vpop.f32.mrb[0].mxu0
      %550 = vmatprep.mubr.f32.mxu0 0.0
      %551 = vmatmul.mubr.f32.gmra.mrb[0].mxu0 %v447
      %v552 = vpop.f32.mrb[0].mxu0
      %v553 = vadd.f32 %v474, %v552
      %v554 = vpop.f32.mrb[0].mxu0
      %555 = vmatprep.mubr.f32.mxu0 0.0
      %556 = vmatmul.mubr.f32.gmra.mrb[0].mxu0 %v448
      %v557 = vpop.f32.mrb[0].mxu0
      %v558 = vadd.f32 %v474, %v557
      %v559 = vpop.f32.mrb[0].mxu0
      %560 = vmatprep.mubr.f32.mxu0 0.0
      %561 = vmatmul.mubr.f32.gmra.mrb[0].mxu0 %v449
      %v562 = vpop.f32.mrb[0].mxu0
      %v563 = vadd.f32 %v474, %v562
      %v564 = vpop.f32.mrb[0].mxu0
      %565 = vmatprep.mubr.f32.mxu0 0.0
      %566 = vmatmul.mubr.f32.gmra.mrb[0].mxu0 %v450
      %v567 = vpop.f32.mrb[0].mxu0
      %v568 = vadd.f32 %v474, %v567
      %v569 = vpop.f32.mrb[0].mxu0
      %570 = vmatprep.mubr.f32.mxu0 0.0
      %571 = vmatmul.mubr.f32.gmra.mrb[0].mxu0 %v451
      %v572 = vpop.f32.mrb[0].mxu0
      %v573 = vadd.f32 %v474, %v572
      %v574 = vpop.f32.mrb[0].mxu0
      %575 = vmatprep.mubr.f32.mxu0 0.0
      %576 = vmatmul.mubr.f32.gmra.mrb[0].mxu0 %v452
      %v577 = vpop.f32.mrb[0].mxu0
      %v578 = vadd.f32 %v474, %v577
      %v579 = vpop.f32.mrb[0].mxu0
      %580 = vdwg.mxu0
      %vm581 = vcmp.ge.f32.partialorder %v543, 0.0
      %vm582 = vcmp.ge.f32.partialorder %v548, 0.0
      %vm583 = vcmp.ge.f32.partialorder %v553, 0.0
      %vm584 = vcmp.ge.f32.partialorder %v558, 0.0
      %vm585 = vcmp.ge.f32.partialorder %v563, 0.0
      %vm586 = vcmp.ge.f32.partialorder %v568, 0.0
      %vm587 = vcmp.ge.f32.partialorder %v573, 0.0
      %vm588 = vcmp.ge.f32.partialorder %v578, 0.0
      %v589 = vmul.f32 %v543, 0.2
      %v590 = vmul.f32 %v548, 0.2
      %v591 = vmul.f32 %v553, 0.2
      %v592 = vmul.f32 %v558, 0.2
      %v593 = vmul.f32 %v563, 0.2
      %v594 = vmul.f32 %v568, 0.2
      %v595 = vmul.f32 %v573, 0.2
      %v596 = vmul.f32 %v578, 0.2
      %v597 = vsel %vm581, %v543, %v589
      %v598 = vsel %vm582, %v548, %v590
      %v599 = vsel %vm583, %v553, %v591
      %v600 = vsel %vm584, %v558, %v592
      %v601 = vsel %vm585, %v563, %v593
      %v602 = vsel %vm586, %v568, %v594
      %v603 = vsel %vm587, %v573, %v595
      %v604 = vsel %vm588, %v578, %v596
      %v605 = vld [vmem:[%s5] sm:$0xff]
      %v606 = vld [vmem:[%s5 + $0x8] sm:$0xff]
      %v607 = vld [vmem:[%s5 + $0x10] sm:$0xff]
      %v608 = vld [vmem:[%s5 + $0x18] sm:$0xff]
      %v609 = vld [vmem:[%s5 + $0x20] sm:$0xff]
      %v610 = vld [vmem:[%s5 + $0x28] sm:$0xff]
      %v611 = vld [vmem:[%s5 + $0x30] sm:$0xff]
      %v612 = vld [vmem:[%s5 + $0x38] sm:$0xff]
      %v613 = vld [vmem:[%s5 + $0x40] sm:$0xff]
      %v614 = vld [vmem:[%s5 + $0x48] sm:$0xff]
      %v615 = vld [vmem:[%s5 + $0x50] sm:$0xff]
      %v616 = vld [vmem:[%s5 + $0x58] sm:$0xff]
      %v617 = vld [vmem:[%s5 + $0x60] sm:$0xff]
      %v618 = vld [vmem:[%s5 + $0x68] sm:$0xff]
      %v619 = vld [vmem:[%s5 + $0x70] sm:$0xff]
      %v620 = vld [vmem:[%s5 + $0x78] sm:$0xff]
      %v621 = vld [vmem:[%s6] sm:$0x1]
      %v623 = vlaneseq
      %v624 = vshrl.u32 %v623, 7
      %v625 = vsub.s32 0, %v624
      %v626 = vrot.slane %v621, %v625
      %628 = vmatprep.subr.mxu0 0.0
      %629 = vmatpush1.msra.mxu0 %v605
      %630 = vmatprep.subr.mxu0 0.0
      %631 = vmatpush1.msra.mxu0 %v606
      %632 = vmatprep.subr.mxu0 0.0
      %633 = vmatpush1.msra.mxu0 %v607
      %634 = vmatprep.subr.mxu0 0.0
      %635 = vmatpush1.msra.mxu0 %v608
      %636 = vmatprep.subr.mxu0 0.0
      %637 = vmatpush1.msra.mxu0 %v609
      %638 = vmatprep.subr.mxu0 0.0
      %639 = vmatpush1.msra.mxu0 %v610
      %640 = vmatprep.subr.mxu0 0.0
      %641 = vmatpush1.msra.mxu0 %v611
      %642 = vmatprep.subr.mxu0 0.0
      %643 = vmatpush1.msra.mxu0 %v612
      %644 = vmatprep.subr.mxu0 0.0
      %645 = vmatpush1.msra.mxu0 %v613
      %646 = vmatprep.subr.mxu0 0.0
      %647 = vmatpush1.msra.mxu0 %v614
      %648 = vmatprep.subr.mxu0 0.0
      %649 = vmatpush1.msra.mxu0 %v615
      %650 = vmatprep.subr.mxu0 0.0
      %651 = vmatpush1.msra.mxu0 %v616
      %652 = vmatprep.subr.mxu0 0.0
      %653 = vmatpush1.msra.mxu0 %v617
      %654 = vmatprep.subr.mxu0 0.0
      %655 = vmatpush1.msra.mxu0 %v618
      %656 = vmatprep.subr.mxu0 0.0
      %657 = vmatpush1.msra.mxu0 %v619
      %658 = vmatprep.subr.mxu0 0.0
      %659 = vmatpush1.msra.mxu0 %v620
      %660 = vmatprep.subr.mxu0 0.0
      %661 = vmatpush1.msra.mxu0 0.0
      %662 = vmatprep.subr.mxu0 0.0
      %663 = vmatpush1.msra.mxu0 0.0
      %664 = vmatprep.subr.mxu0 0.0
      %665 = vmatpush1.msra.mxu0 0.0
      %666 = vmatprep.subr.mxu0 0.0
      %667 = vmatpush1.msra.mxu0 0.0
      %668 = vmatprep.subr.mxu0 0.0
      %669 = vmatpush1.msra.mxu0 0.0
      %670 = vmatprep.subr.mxu0 0.0
      %671 = vmatpush1.msra.mxu0 0.0
      %672 = vmatprep.subr.mxu0 0.0
      %673 = vmatpush1.msra.mxu0 0.0
      %674 = vmatprep.subr.mxu0 0.0
      %675 = vmatpush1.msra.mxu0 0.0
      %676 = vmatprep.subr.mxu0 0.0
      %677 = vmatpush1.msra.mxu0 0.0
      %678 = vmatprep.subr.mxu0 0.0
      %679 = vmatpush1.msra.mxu0 0.0
      %680 = vmatprep.subr.mxu0 0.0
      %681 = vmatpush1.msra.mxu0 0.0
      %682 = vmatprep.subr.mxu0 0.0
      %683 = vmatpush1.msra.mxu0 0.0
      %684 = vmatprep.subr.mxu0 0.0
      %685 = vmatpush1.msra.mxu0 0.0
      %686 = vmatprep.subr.mxu0 0.0
      %687 = vmatpush1.msra.mxu0 0.0
      %688 = vmatprep.subr.mxu0 0.0
      %689 = vmatpush1.msra.mxu0 0.0
      %690 = vmatprep.subr.mxu0 0.0
      %691 = vmatpush1.msra.mxu0 0.0
      %692 = vmatprep.mubr.f32.mxu0 0.0
      %693 = vmatmul.mubr.f32.gmra.mrb[0].mxu0 %v597
      %v694 = vpop.f32.mrb[0].mxu0
      %v695 = vadd.f32 %v626, %v694
      %v696 = vpop.f32.mrb[0].mxu0
      %697 = vmatprep.mubr.f32.mxu0 0.0
      %698 = vmatmul.mubr.f32.gmra.mrb[0].mxu0 %v598
      %v699 = vpop.f32.mrb[0].mxu0
      %v700 = vadd.f32 %v626, %v699
      %v701 = vpop.f32.mrb[0].mxu0
      %702 = vmatprep.mubr.f32.mxu0 0.0
      %703 = vmatmul.mubr.f32.gmra.mrb[0].mxu0 %v599
      %v704 = vpop.f32.mrb[0].mxu0
      %v705 = vadd.f32 %v626, %v704
      %v706 = vpop.f32.mrb[0].mxu0
      %707 = vmatprep.mubr.f32.mxu0 0.0
      %708 = vmatmul.mubr.f32.gmra.mrb[0].mxu0 %v600
      %v709 = vpop.f32.mrb[0].mxu0
      %v710 = vadd.f32 %v626, %v709
      %v711 = vpop.f32.mrb[0].mxu0
      %712 = vmatprep.mubr.f32.mxu0 0.0
      %713 = vmatmul.mubr.f32.gmra.mrb[0].mxu0 %v601
      %v714 = vpop.f32.mrb[0].mxu0
      %v715 = vadd.f32 %v626, %v714
      %v716 = vpop.f32.mrb[0].mxu0
      %717 = vmatprep.mubr.f32.mxu0 0.0
      %718 = vmatmul.mubr.f32.gmra.mrb[0].mxu0 %v602
      %v719 = vpop.f32.mrb[0].mxu0
      %v720 = vadd.f32 %v626, %v719
      %v721 = vpop.f32.mrb[0].mxu0
      %722 = vmatprep.mubr.f32.mxu0 0.0
      %723 = vmatmul.mubr.f32.gmra.mrb[0].mxu0 %v603
      %v724 = vpop.f32.mrb[0].mxu0
      %v725 = vadd.f32 %v626, %v724
      %v726 = vpop.f32.mrb[0].mxu0
      %727 = vmatprep.mubr.f32.mxu0 0.0
      %728 = vmatmul.mubr.f32.gmra.mrb[0].mxu0 %v604
      %v729 = vpop.f32.mrb[0].mxu0
      %v730 = vadd.f32 %v626, %v729
      %v731 = vpop.f32.mrb[0].mxu0
      %732 = vdwg.mxu0
      %vm733 = vcmask 64512
      %734 = vst.msk [vmem:[%s280] sm:$0xff] %vm733, %v695
      %735 = vst.msk [vmem:[%s280 + $0x8] sm:$0xff] %vm733, %v700
      %736 = vst.msk [vmem:[%s280 + $0x10] sm:$0xff] %vm733, %v705
      %737 = vst.msk [vmem:[%s280 + $0x18] sm:$0xff] %vm733, %v710
      %738 = vst.msk [vmem:[%s280 + $0x20] sm:$0xff] %vm733, %v715
      %739 = vst.msk [vmem:[%s280 + $0x28] sm:$0xff] %vm733, %v720
      %740 = vst.msk [vmem:[%s280 + $0x30] sm:$0xff] %vm733, %v725
      %741 = vst.msk [vmem:[%s280 + $0x38] sm:$0xff] %vm733, %v730
      %s742 = smul.u32 8, %s18
      %p743 = scmp.lt.s32.totalorder %s742, 31
      %s744 = scalar_select %p743, %s742, 31
      %s745 = smul.addr %s744, 8
      %s746 = scalar_lea.vmem %s7, %s745
      // Predicated region
      $region49: #{tpu_custom_call.1} parent=47 // pred_check
        %p747 = pneg %p188
      $region50: #{tpu_custom_call.1} parent=47 // pred_check_branch
        %749 = sbr.rel (%p747) target = $region52
      $region51: #{tpu_custom_call.1} parent=47 // pred_region
        %s750 = smul.u32 8, %s18
      $region52: #{tpu_custom_call.1} parent=47 // pred_fallthru
        _
    $region48: #{tpu_custom_call.1} parent=5 // pred_fallthru
      _
    %p751 = scmp.le.s32.totalorder 2, %s13
    // Predicated region
    $region53: #{tpu_custom_call.1} parent=5 // pred_check
      %p752 = pneg %p751
    $region54: #{tpu_custom_call.1} parent=5 // pred_check_branch
      %754 = sbr.rel (%p752) target = $region56
    $region55: #{tpu_custom_call.1} parent=5 // pred_region
      %s755 = ssub.s32 %s13, 2
      // Predicated region
      $region57: #{tpu_custom_call.1} parent=55 // pred_check
        %p756 = pneg %p194
      $region58: #{tpu_custom_call.1} parent=55 // pred_check_branch
        %758 = sbr.rel (%p756) target = $region60
      $region59: #{tpu_custom_call.1} parent=55 // pred_region
        %s759 = smul.u32 8, %s19
        %p760 = scmp.lt.s32.totalorder %s759, 31
        %s761 = scalar_select %p760, %s759, 31
        %s762 = smul.addr %s761, 8
        %s763 = scalar_lea.vmem %s7, %s762
      $region60: #{tpu_custom_call.1} parent=55 // pred_fallthru
        _
    $region56: #{tpu_custom_call.1} parent=5 // pred_fallthru
      _
  $region6: #{tpu_custom_call.1} parent=0 // loop_footer
    %s17 = sadd.s32 1, %s13
  $region7: #{tpu_custom_call.1} parent=0 // loop_footer_branch
    %12 = sbr.rel target = $region3
  $region8: #{tpu_custom_call.1} parent=0 // loop_exit
    _

// kernel: tpu_custom_call.1
$region0: #{tpu_custom_call.1}
  #allocation0 [shape = 'u32[]', space=smem, size = 0x4, offset = 0x4, fixed_abs, tag = 'smem constant byte address 0x4 - core index']
  #allocation1 [shape = 'u32[144,128]{1,0:T(1,128)}', space=vmem, size = 0x12000, scoped, tag = 'internal scratch']
  %s0 = inlined_call_operand.vmem [shape: f32[256,16], index: 0, kind: input, shape index: {}]
  %s1 = inlined_call_operand.vmem [shape: f32[16,128], index: 1, kind: input, shape index: {}]
  %s2 = inlined_call_operand.vmem [shape: f32[1,128], index: 2, kind: input, shape index: {}]
  %s3 = inlined_call_operand.vmem [shape: f32[128,128], index: 3, kind: input, shape index: {}]
  %s4 = inlined_call_operand.vmem [shape: f32[1,128], index: 4, kind: input, shape index: {}]
  %s5 = inlined_call_operand.vmem [shape: f32[128,8], index: 5, kind: input, shape index: {}]
  %s6 = inlined_call_operand.vmem [shape: f32[1,8], index: 6, kind: input, shape index: {}]
  %s7 = inlined_call_operand.vmem [shape: f32[256,8], index: 7, kind: output, shape index: {}]
  %s8 = sld [smem:[#allocation0]]
  $region61: #{tpu_custom_call.1} parent=0
    _
  %s10 = ssub.s32 1, %s8
  %s11 = scalar_select 0, %s10, %s8
  loop: start=0, step=1, limit=6
  $region2: #{tpu_custom_call.1} parent=0 // loop_pre_header
    _
  $region3: #{tpu_custom_call.1} parent=0 // loop_header
    %s13 = sphi 0, %s17
    %p14 = scmp.ge.s32.totalorder %s13, 6
    %s23 = sphi 0, %s25
    %s26 = sphi 0, %s23
    %s27 = sphi 0, %s26
    %s43 = sphi 0, %s27
    %s47 = sphi 0, %s47
    %s49 = sphi 0, %s47
    %s50 = sphi 0, %s49
    %s64 = sphi 0, %s50
    %s68 = sphi 0, %s68
    %s70 = sphi 0, %s68
    %s71 = sphi 0, %s70
    %s85 = sphi 0, %s71
    %s89 = sphi 0, %s89
    %s91 = sphi 0, %s89
    %s92 = sphi 0, %s91
    %s106 = sphi 0, %s92
    %s110 = sphi 0, %s110
    %s112 = sphi 0, %s110
    %s113 = sphi 0, %s112
    %s127 = sphi 0, %s113
    %s131 = sphi 0, %s131
    %s133 = sphi 0, %s131
    %s134 = sphi 0, %s133
    %s148 = sphi 0, %s134
    %s152 = sphi 0, %s152
    %s154 = sphi 0, %s152
    %s155 = sphi 0, %s154
    %s169 = sphi 0, %s155
    %s175 = sphi 0, %s177
    %s178 = sphi 0, %s175
    %s179 = sphi 0, %s178
    %s195 = sphi 0, %s179
  $region4: #{tpu_custom_call.1} parent=0 // loop_header_branch
    %16 = sbr.rel (%p14) target = $region8
  $region5: #{tpu_custom_call.1} parent=0 // loop_body
    %s18 = ssub.s32 %s13, 1
    %s19 = ssub.s32 %s13, 2
    %s20 = sadd.s32 %s13, 1
    %s21 = ssub.s32 %s13, %s20
    %p22 = scmp.eq.s32.totalorder %s21, 0
    %s24 = sadd.s32 %s23, 1
    %s25 = scalar_select %p22, %s23, %s24
    %p28 = pneg %p22
    %p29 = scmp.eq.s32.totalorder %s13, 3
    %p30 = por %p28, %p29
    %p31 = scmp.ne.s32.totalorder %s23, %s26
    %p32 = scmp.eq.s32.totalorder %s13, 0
    %p33 = por %p31, %p32
    %p34 = scmp.ne.s32.totalorder %s23, %s26
    %p35 = scmp.eq.s32.totalorder %s18, 3
    %p36 = por %p34, %p35
    %p37 = scmp.ne.s32.totalorder %s26, %s27
    %p38 = scmp.eq.s32.totalorder %s18, 0
    %p39 = por %p37, %p38
    %p40 = scmp.ne.s32.totalorder %s26, %s27
    %p41 = scmp.eq.s32.totalorder %s19, 3
    %p42 = por %p40, %p41
    %p44 = scmp.ne.s32.totalorder %s27, %s43
    %p45 = scmp.eq.s32.totalorder %s19, 0
    %p46 = por %p44, %p45
    %s48 = sadd.s32 %s47, 1
    %p51 = scmp.eq.s32.totalorder %s13, 3
    %p52 = scmp.ne.s32.totalorder %s47, %s49
    %p53 = scmp.eq.s32.totalorder %s13, 0
    %p54 = por %p52, %p53
    %p55 = scmp.ne.s32.totalorder %s47, %s49
    %p56 = scmp.eq.s32.totalorder %s18, 3
    %p57 = por %p55, %p56
    %p58 = scmp.ne.s32.totalorder %s49, %s50
    %p59 = scmp.eq.s32.totalorder %s18, 0
    %p60 = por %p58, %p59
    %p61 = scmp.ne.s32.totalorder %s49, %s50
    %p62 = scmp.eq.s32.totalorder %s19, 3
    %p63 = por %p61, %p62
    %p65 = scmp.ne.s32.totalorder %s50, %s64
    %p66 = scmp.eq.s32.totalorder %s19, 0
    %p67 = por %p65, %p66
    %s69 = sadd.s32 %s68, 1
    %p72 = scmp.eq.s32.totalorder %s13, 3
    %p73 = scmp.ne.s32.totalorder %s68, %s70
    %p74 = scmp.eq.s32.totalorder %s13, 0
    %p75 = por %p73, %p74
    %p76 = scmp.ne.s32.totalorder %s68, %s70
    %p77 = scmp.eq.s32.totalorder %s18, 3
    %p78 = por %p76, %p77
    %p79 = scmp.ne.s32.totalorder %s70, %s71
    %p80 = scmp.eq.s32.totalorder %s18, 0
    %p81 = por %p79, %p80
    %p82 = scmp.ne.s32.totalorder %s70, %s71
    %p83 = scmp.eq.s32.totalorder %s19, 3
    %p84 = por %p82, %p83
    %p86 = scmp.ne.s32.totalorder %s71, %s85
    %p87 = scmp.eq.s32.totalorder %s19, 0
    %p88 = por %p86, %p87
    %s90 = sadd.s32 %s89, 1
    %p93 = scmp.eq.s32.totalorder %s13, 3
    %p94 = scmp.ne.s32.totalorder %s89, %s91
    %p95 = scmp.eq.s32.totalorder %s13, 0
    %p96 = por %p94, %p95
    %p97 = scmp.ne.s32.totalorder %s89, %s91
    %p98 = scmp.eq.s32.totalorder %s18, 3
    %p99 = por %p97, %p98
    %p100 = scmp.ne.s32.totalorder %s91, %s92
    %p101 = scmp.eq.s32.totalorder %s18, 0
    %p102 = por %p100, %p101
    %p103 = scmp.ne.s32.totalorder %s91, %s92
    %p104 = scmp.eq.s32.totalorder %s19, 3
    %p105 = por %p103, %p104
    %p107 = scmp.ne.s32.totalorder %s92, %s106
    %p108 = scmp.eq.s32.totalorder %s19, 0
    %p109 = por %p107, %p108
    %s111 = sadd.s32 %s110, 1
    %p114 = scmp.eq.s32.totalorder %s13, 3
    %p115 = scmp.ne.s32.totalorder %s110, %s112
    %p116 = scmp.eq.s32.totalorder %s13, 0
    %p117 = por %p115, %p116
    %p118 = scmp.ne.s32.totalorder %s110, %s112
    %p119 = scmp.eq.s32.totalorder %s18, 3
    %p120 = por %p118, %p119
    %p121 = scmp.ne.s32.totalorder %s112, %s113
    %p122 = scmp.eq.s32.totalorder %s18, 0
    %p123 = por %p121, %p122
    %p124 = scmp.ne.s32.totalorder %s112, %s113
    %p125 = scmp.eq.s32.totalorder %s19, 3
    %p126 = por %p124, %p125
    %p128 = scmp.ne.s32.totalorder %s113, %s127
    %p129 = scmp.eq.s32.totalorder %s19, 0
    %p130 = por %p128, %p129
    %s132 = sadd.s32 %s131, 1
    %p135 = scmp.eq.s32.totalorder %s13, 3
    %p136 = scmp.ne.s32.totalorder %s131, %s133
    %p137 = scmp.eq.s32.totalorder %s13, 0
    %p138 = por %p136, %p137
    %p139 = scmp.ne.s32.totalorder %s131, %s133
    %p140 = scmp.eq.s32.totalorder %s18, 3
    %p141 = por %p139, %p140
    %p142 = scmp.ne.s32.totalorder %s133, %s134
    %p143 = scmp.eq.s32.totalorder %s18, 0
    %p144 = por %p142, %p143
    %p145 = scmp.ne.s32.totalorder %s133, %s134
    %p146 = scmp.eq.s32.totalorder %s19, 3
    %p147 = por %p145, %p146
    %p149 = scmp.ne.s32.totalorder %s134, %s148
    %p150 = scmp.eq.s32.totalorder %s19, 0
    %p151 = por %p149, %p150
    %s153 = sadd.s32 %s152, 1
    %p156 = scmp.eq.s32.totalorder %s13, 3
    %p157 = scmp.ne.s32.totalorder %s152, %s154
    %p158 = scmp.eq.s32.totalorder %s13, 0
    %p159 = por %p157, %p158
    %p160 = scmp.ne.s32.totalorder %s152, %s154
    %p161 = scmp.eq.s32.totalorder %s18, 3
    %p162 = por %p160, %p161
    %p163 = scmp.ne.s32.totalorder %s154, %s155
    %p164 = scmp.eq.s32.totalorder %s18, 0
    %p165 = por %p163, %p164
    %p166 = scmp.ne.s32.totalorder %s154, %s155
    %p167 = scmp.eq.s32.totalorder %s19, 3
    %p168 = por %p166, %p167
    %p170 = scmp.ne.s32.totalorder %s155, %s169
    %p171 = scmp.eq.s32.totalorder %s19, 0
    %p172 = por %p170, %p171
    %s173 = ssub.s32 %s13, %s20
    %p174 = scmp.eq.s32.totalorder %s173, 0
    %s176 = sadd.s32 %s175, 1
    %s177 = scalar_select %p174, %s175, %s176
    %p180 = pneg %p174
    %p181 = scmp.eq.s32.totalorder %s13, 3
    %p182 = por %p180, %p181
    %p183 = scmp.ne.s32.totalorder %s175, %s178
    %p184 = scmp.eq.s32.totalorder %s13, 0
    %p185 = por %p183, %p184
    %p186 = scmp.ne.s32.totalorder %s175, %s178
    %p187 = scmp.eq.s32.totalorder %s18, 3
    %p188 = por %p186, %p187
    %p189 = scmp.ne.s32.totalorder %s178, %s179
    %p190 = scmp.eq.s32.totalorder %s18, 0
    %p191 = por %p189, %p190
    %p192 = scmp.ne.s32.totalorder %s178, %s179
    %p193 = scmp.eq.s32.totalorder %s19, 3
    %p194 = por %p192, %p193
    %p196 = scmp.ne.s32.totalorder %s179, %s195
    %p197 = scmp.eq.s32.totalorder %s19, 0
    %p198 = por %p196, %p197
    %p199 = scmp.le.s32.totalorder 1, %s13
    %p200 = scmp.lt.s32.totalorder %s13, 5
    %p201 = pnand %p199, %p200
    %p202 = pneg %p201
    // Predicated region
    $region9: #{tpu_custom_call.1} parent=5 // pred_check
      _
    $region10: #{tpu_custom_call.1} parent=5 // pred_check_branch
      %204 = sbr.rel (%p201) target = $region12
    $region11: #{tpu_custom_call.1} parent=5 // pred_region
      %s205 = ssub.s32 %s13, 1
      // Predicated region
      $region13: #{tpu_custom_call.1} parent=11 // pred_check
        %p206 = pneg %p60
      $region14: #{tpu_custom_call.1} parent=11 // pred_check_branch
        %208 = sbr.rel (%p206) target = $region16
      $region15: #{tpu_custom_call.1} parent=11 // pred_region
        _
      $region16: #{tpu_custom_call.1} parent=11 // pred_fallthru
        _
      // Predicated region
      $region17: #{tpu_custom_call.1} parent=11 // pred_check
        %p209 = pneg %p81
      $region18: #{tpu_custom_call.1} parent=11 // pred_check_branch
        %211 = sbr.rel (%p209) target = $region20
      $region19: #{tpu_custom_call.1} parent=11 // pred_region
        _
      $region20: #{tpu_custom_call.1} parent=11 // pred_fallthru
        _
      // Predicated region
      $region21: #{tpu_custom_call.1} parent=11 // pred_check
        %p212 = pneg %p102
      $region22: #{tpu_custom_call.1} parent=11 // pred_check_branch
        %214 = sbr.rel (%p212) target = $region24
      $region23: #{tpu_custom_call.1} parent=11 // pred_region
        _
      $region24: #{tpu_custom_call.1} parent=11 // pred_fallthru
        _
      // Predicated region
      $region25: #{tpu_custom_call.1} parent=11 // pred_check
        %p215 = pneg %p123
      $region26: #{tpu_custom_call.1} parent=11 // pred_check_branch
        %217 = sbr.rel (%p215) target = $region28
      $region27: #{tpu_custom_call.1} parent=11 // pred_region
        _
      $region28: #{tpu_custom_call.1} parent=11 // pred_fallthru
        _
      // Predicated region
      $region29: #{tpu_custom_call.1} parent=11 // pred_check
        %p218 = pneg %p144
      $region30: #{tpu_custom_call.1} parent=11 // pred_check_branch
        %220 = sbr.rel (%p218) target = $region32
      $region31: #{tpu_custom_call.1} parent=11 // pred_region
        _
      $region32: #{tpu_custom_call.1} parent=11 // pred_fallthru
        _
      // Predicated region
      $region33: #{tpu_custom_call.1} parent=11 // pred_check
        %p221 = pneg %p165
      $region34: #{tpu_custom_call.1} parent=11 // pred_check_branch
        %223 = sbr.rel (%p221) target = $region36
      $region35: #{tpu_custom_call.1} parent=11 // pred_region
        _
      $region36: #{tpu_custom_call.1} parent=11 // pred_fallthru
        _
    $region12: #{tpu_custom_call.1} parent=5 // pred_fallthru
      _
    %p224 = scmp.lt.s32.totalorder %s13, 4
    // Predicated region
    $region37: #{tpu_custom_call.1} parent=5 // pred_check
      %p225 = pneg %p224
    $region38: #{tpu_custom_call.1} parent=5 // pred_check_branch
      %227 = sbr.rel (%p225) target = $region40
    $region39: #{tpu_custom_call.1} parent=5 // pred_region
      // Predicated region
      $region41: #{tpu_custom_call.1} parent=39 // pred_check
        %p228 = pneg %p33
      $region42: #{tpu_custom_call.1} parent=39 // pred_check_branch
        %230 = sbr.rel (%p228) target = $region44
      $region43: #{tpu_custom_call.1} parent=39 // pred_region
        %s231 = smul.u32 8, %s13
        %p232 = scmp.lt.s32.totalorder %s231, 31
        %s233 = scalar_select %p232, %s231, 31
        %s234 = smul.addr %s233, 8
        %s235 = scalar_lea.vmem %s0, %s234
        %s236 = smul.u32 8, %s13
      $region44: #{tpu_custom_call.1} parent=39 // pred_fallthru
        _
    $region40: #{tpu_custom_call.1} parent=5 // pred_fallthru
      _
    %p237 = scmp.le.s32.totalorder 1, %s13
    %p238 = scmp.lt.s32.totalorder %s13, 5
    %p239 = pnand %p237, %p238
    %p240 = pneg %p239
    // Predicated region
    $region45: #{tpu_custom_call.1} parent=5 // pred_check
      _
    $region46: #{tpu_custom_call.1} parent=5 // pred_check_branch
      %242 = sbr.rel (%p239) target = $region48
    $region47: #{tpu_custom_call.1} parent=5 // pred_region
      %s243 = ssub.s32 %s13, 1
      %s244 = smul.u32 8, %s18
      %p245 = scmp.lt.s32.totalorder %s244, 31
      %s246 = scalar_select %p245, %s244, 31
      %s247 = smul.addr %s246, 8
      %s248 = scalar_lea.vmem %s0, %s247
      %p249 = pneg %p39
      %p250 = pneg %p36
      %p251 = pneg %p60
      %p252 = pneg %p57
      %p253 = pneg %p81
      %p254 = pneg %p78
      %p255 = pneg %p102
      %p256 = pneg %p99
      %p257 = pneg %p123
      %p258 = pneg %p120
      %p259 = pneg %p144
      %p260 = pneg %p141
      %p261 = pneg %p165
      %p262 = pneg %p162
      %p263 = pneg %p191
      %p264 = pneg %p188
      %s265 = smul.u32 8, %s18
      %p266 = scmp.lt.s32.totalorder %s265, 31
      %s267 = scalar_select %p266, %s265, 31
      %s268 = smul.addr %s267, 8
      %s269 = scalar_lea.vmem %s7, %s268
      %s270 = smul.u32 8, %s18
      %p271 = scmp.lt.s32.totalorder %s270, 31
      %s272 = scalar_select %p271, %s270, 31
      %s273 = smul.addr %s272, 8
      %s274 = scalar_lea.vmem %s0, %s273
      %s275 = smul.u32 8, %s18
      %s276 = smul.u32 8, %s18
      %p277 = scmp.lt.s32.totalorder %s276, 31
      %s278 = scalar_select %p277, %s276, 31
      %s279 = smul.addr %s278, 8
      %s280 = scalar_lea.vmem %s7, %s279
      %s281 = smul.u32 8, %s18
      %v282 = vld [vmem:[%s274] sm:$0xff]
      %v283 = vld [vmem:[%s274 + $0x8] sm:$0xff]
      %v284 = vld [vmem:[%s274 + $0x10] sm:$0xff]
      %v285 = vld [vmem:[%s274 + $0x18] sm:$0xff]
      %v286 = vld [vmem:[%s274 + $0x20] sm:$0xff]
      %v287 = vld [vmem:[%s274 + $0x28] sm:$0xff]
      %v288 = vld [vmem:[%s274 + $0x30] sm:$0xff]
      %v289 = vld [vmem:[%s274 + $0x38] sm:$0xff]
      %v290 = vld [vmem:[%s1] sm:$0xff]
      %v291 = vld [vmem:[%s1 + $0x8] sm:$0xff]
      %v292 = vld [vmem:[%s2] sm:$0x1]
      %v294 = vlaneseq
      %v295 = vshrl.u32 %v294, 7
      %v296 = vsub.s32 0, %v295
      %v297 = vrot.slane %v292, %v296
      %vm299 = vcmask 130048
      %v301 = vsel %vm299, %v282, 0
      %v304 = vsel %vm299, %v283, 0
      %v307 = vsel %vm299, %v284, 0
      %v310 = vsel %vm299, %v285, 0
      %v313 = vsel %vm299, %v286, 0
      %v316 = vsel %vm299, %v287, 0
      %v319 = vsel %vm299, %v288, 0
      %v322 = vsel %vm299, %v289, 0
      %324 = vmatprep.subr.mxu0 0.0
      %325 = vmatpush1.msra.mxu0 %v290
      %326 = vmatprep.subr.mxu0 0.0
      %327 = vmatpush1.msra.mxu0 %v291
      %328 = vmatprep.subr.mxu0 0.0
      %329 = vmatpush1.msra.mxu0 0.0
      %330 = vmatprep.subr.mxu0 0.0
      %331 = vmatpush1.msra.mxu0 0.0
      %332 = vmatprep.subr.mxu0 0.0
      %333 = vmatpush1.msra.mxu0 0.0
      %334 = vmatprep.subr.mxu0 0.0
      %335 = vmatpush1.msra.mxu0 0.0
      %336 = vmatprep.subr.mxu0 0.0
      %337 = vmatpush1.msra.mxu0 0.0
      %338 = vmatprep.subr.mxu0 0.0
      %339 = vmatpush1.msra.mxu0 0.0
      %340 = vmatprep.subr.mxu0 0.0
      %341 = vmatpush1.msra.mxu0 0.0
      %342 = vmatprep.subr.mxu0 0.0
      %343 = vmatpush1.msra.mxu0 0.0
      %344 = vmatprep.subr.mxu0 0.0
      %345 = vmatpush1.msra.mxu0 0.0
      %346 = vmatprep.subr.mxu0 0.0
      %347 = vmatpush1.msra.mxu0 0.0
      %348 = vmatprep.subr.mxu0 0.0
      %349 = vmatpush1.msra.mxu0 0.0
      %350 = vmatprep.subr.mxu0 0.0
      %351 = vmatpush1.msra.mxu0 0.0
      %352 = vmatprep.subr.mxu0 0.0
      %353 = vmatpush1.msra.mxu0 0.0
      %354 = vmatprep.subr.mxu0 0.0
      %355 = vmatpush1.msra.mxu0 0.0
      %356 = vmatprep.subr.mxu0 0.0
      %357 = vmatpush1.msra.mxu0 0.0
      %358 = vmatprep.subr.mxu0 0.0
      %359 = vmatpush1.msra.mxu0 0.0
      %360 = vmatprep.subr.mxu0 0.0
      %361 = vmatpush1.msra.mxu0 0.0
      %362 = vmatprep.subr.mxu0 0.0
      %363 = vmatpush1.msra.mxu0 0.0
      %364 = vmatprep.subr.mxu0 0.0
      %365 = vmatpush1.msra.mxu0 0.0
      %366 = vmatprep.subr.mxu0 0.0
      %367 = vmatpush1.msra.mxu0 0.0
      %368 = vmatprep.subr.mxu0 0.0
      %369 = vmatpush1.msra.mxu0 0.0
      %370 = vmatprep.subr.mxu0 0.0
      %371 = vmatpush1.msra.mxu0 0.0
      %372 = vmatprep.subr.mxu0 0.0
      %373 = vmatpush1.msra.mxu0 0.0
      %374 = vmatprep.subr.mxu0 0.0
      %375 = vmatpush1.msra.mxu0 0.0
      %376 = vmatprep.subr.mxu0 0.0
      %377 = vmatpush1.msra.mxu0 0.0
      %378 = vmatprep.subr.mxu0 0.0
      %379 = vmatpush1.msra.mxu0 0.0
      %380 = vmatprep.subr.mxu0 0.0
      %381 = vmatpush1.msra.mxu0 0.0
      %382 = vmatprep.subr.mxu0 0.0
      %383 = vmatpush1.msra.mxu0 0.0
      %384 = vmatprep.subr.mxu0 0.0
      %385 = vmatpush1.msra.mxu0 0.0
      %386 = vmatprep.subr.mxu0 0.0
      %387 = vmatpush1.msra.mxu0 0.0
      %388 = vmatprep.mubr.f32.mxu0 0.0
      %389 = vmatmul.mubr.f32.gmra.mrb[0].mxu0 %v301
      %v390 = vpop.f32.mrb[0].mxu0
      %v391 = vadd.f32 %v297, %v390
      %v392 = vpop.f32.mrb[0].mxu0
      %393 = vmatprep.mubr.f32.mxu0 0.0
      %394 = vmatmul.mubr.f32.gmra.mrb[0].mxu0 %v304
      %v395 = vpop.f32.mrb[0].mxu0
      %v396 = vadd.f32 %v297, %v395
      %v397 = vpop.f32.mrb[0].mxu0
      %398 = vmatprep.mubr.f32.mxu0 0.0
      %399 = vmatmul.mubr.f32.gmra.mrb[0].mxu0 %v307
      %v400 = vpop.f32.mrb[0].mxu0
      %v401 = vadd.f32 %v297, %v400
      %v402 = vpop.f32.mrb[0].mxu0
      %403 = vmatprep.mubr.f32.mxu0 0.0
      %404 = vmatmul.mubr.f32.gmra.mrb[0].mxu0 %v310
      %v405 = vpop.f32.mrb[0].mxu0
      %v406 = vadd.f32 %v297, %v405
      %v407 = vpop.f32.mrb[0].mxu0
      %408 = vmatprep.mubr.f32.mxu0 0.0
      %409 = vmatmul.mubr.f32.gmra.mrb[0].mxu0 %v313
      %v410 = vpop.f32.mrb[0].mxu0
      %v411 = vadd.f32 %v297, %v410
      %v412 = vpop.f32.mrb[0].mxu0
      %413 = vmatprep.mubr.f32.mxu0 0.0
      %414 = vmatmul.mubr.f32.gmra.mrb[0].mxu0 %v316
      %v415 = vpop.f32.mrb[0].mxu0
      %v416 = vadd.f32 %v297, %v415
      %v417 = vpop.f32.mrb[0].mxu0
      %418 = vmatprep.mubr.f32.mxu0 0.0
      %419 = vmatmul.mubr.f32.gmra.mrb[0].mxu0 %v319
      %v420 = vpop.f32.mrb[0].mxu0
      %v421 = vadd.f32 %v297, %v420
      %v422 = vpop.f32.mrb[0].mxu0
      %423 = vmatprep.mubr.f32.mxu0 0.0
      %424 = vmatmul.mubr.f32.gmra.mrb[0].mxu0 %v322
      %v425 = vpop.f32.mrb[0].mxu0
      %v426 = vadd.f32 %v297, %v425
      %v427 = vpop.f32.mrb[0].mxu0
      %428 = vdwg.mxu0
      %vm429 = vcmp.ge.f32.partialorder %v391, 0.0
      %vm430 = vcmp.ge.f32.partialorder %v396, 0.0
      %vm431 = vcmp.ge.f32.partialorder %v401, 0.0
      %vm432 = vcmp.ge.f32.partialorder %v406, 0.0
      %vm433 = vcmp.ge.f32.partialorder %v411, 0.0
      %vm434 = vcmp.ge.f32.partialorder %v416, 0.0
      %vm435 = vcmp.ge.f32.partialorder %v421, 0.0
      %vm436 = vcmp.ge.f32.partialorder %v426, 0.0
      %v437 = vmul.f32 %v391, 0.2
      %v438 = vmul.f32 %v396, 0.2
      %v439 = vmul.f32 %v401, 0.2
      %v440 = vmul.f32 %v406, 0.2
      %v441 = vmul.f32 %v411, 0.2
      %v442 = vmul.f32 %v416, 0.2
      %v443 = vmul.f32 %v421, 0.2
      %v444 = vmul.f32 %v426, 0.2
      %v445 = vsel %vm429, %v391, %v437
      %v446 = vsel %vm430, %v396, %v438
      %v447 = vsel %vm431, %v401, %v439
      %v448 = vsel %vm432, %v406, %v440
      %v449 = vsel %vm433, %v411, %v441
      %v450 = vsel %vm434, %v416, %v442
      %v451 = vsel %vm435, %v421, %v443
      %v452 = vsel %vm436, %v426, %v444
      %v453 = vld [vmem:[%s3] sm:$0xff]
      %v454 = vld [vmem:[%s3 + $0x8] sm:$0xff]
      %v455 = vld [vmem:[%s3 + $0x10] sm:$0xff]
      %v456 = vld [vmem:[%s3 + $0x18] sm:$0xff]
      %v457 = vld [vmem:[%s3 + $0x20] sm:$0xff]
      %v458 = vld [vmem:[%s3 + $0x28] sm:$0xff]
      %v459 = vld [vmem:[%s3 + $0x30] sm:$0xff]
      %v460 = vld [vmem:[%s3 + $0x38] sm:$0xff]
      %v461 = vld [vmem:[%s3 + $0x40] sm:$0xff]
      %v462 = vld [vmem:[%s3 + $0x48] sm:$0xff]
      %v463 = vld [vmem:[%s3 + $0x50] sm:$0xff]
      %v464 = vld [vmem:[%s3 + $0x58] sm:$0xff]
      %v465 = vld [vmem:[%s3 + $0x60] sm:$0xff]
      %v466 = vld [vmem:[%s3 + $0x68] sm:$0xff]
      %v467 = vld [vmem:[%s3 + $0x70] sm:$0xff]
      %v468 = vld [vmem:[%s3 + $0x78] sm:$0xff]
      %v469 = vld [vmem:[%s4] sm:$0x1]
      %v471 = vlaneseq
      %v472 = vshrl.u32 %v471, 7
      %v473 = vsub.s32 0, %v472
      %v474 = vrot.slane %v469, %v473
      %476 = vmatprep.subr.mxu0 0.0
      %477 = vmatpush1.msra.mxu0 %v453
      %478 = vmatprep.subr.mxu0 0.0
      %479 = vmatpush1.msra.mxu0 %v454
      %480 = vmatprep.subr.mxu0 0.0
      %481 = vmatpush1.msra.mxu0 %v455
      %482 = vmatprep.subr.mxu0 0.0
      %483 = vmatpush1.msra.mxu0 %v456
      %484 = vmatprep.subr.mxu0 0.0
      %485 = vmatpush1.msra.mxu0 %v457
      %486 = vmatprep.subr.mxu0 0.0
      %487 = vmatpush1.msra.mxu0 %v458
      %488 = vmatprep.subr.mxu0 0.0
      %489 = vmatpush1.msra.mxu0 %v459
      %490 = vmatprep.subr.mxu0 0.0
      %491 = vmatpush1.msra.mxu0 %v460
      %492 = vmatprep.subr.mxu0 0.0
      %493 = vmatpush1.msra.mxu0 %v461
      %494 = vmatprep.subr.mxu0 0.0
      %495 = vmatpush1.msra.mxu0 %v462
      %496 = vmatprep.subr.mxu0 0.0
      %497 = vmatpush1.msra.mxu0 %v463
      %498 = vmatprep.subr.mxu0 0.0
      %499 = vmatpush1.msra.mxu0 %v464
      %500 = vmatprep.subr.mxu0 0.0
      %501 = vmatpush1.msra.mxu0 %v465
      %502 = vmatprep.subr.mxu0 0.0
      %503 = vmatpush1.msra.mxu0 %v466
      %504 = vmatprep.subr.mxu0 0.0
      %505 = vmatpush1.msra.mxu0 %v467
      %506 = vmatprep.subr.mxu0 0.0
      %507 = vmatpush1.msra.mxu0 %v468
      %508 = vmatprep.subr.mxu0 0.0
      %509 = vmatpush1.msra.mxu0 0.0
      %510 = vmatprep.subr.mxu0 0.0
      %511 = vmatpush1.msra.mxu0 0.0
      %512 = vmatprep.subr.mxu0 0.0
      %513 = vmatpush1.msra.mxu0 0.0
      %514 = vmatprep.subr.mxu0 0.0
      %515 = vmatpush1.msra.mxu0 0.0
      %516 = vmatprep.subr.mxu0 0.0
      %517 = vmatpush1.msra.mxu0 0.0
      %518 = vmatprep.subr.mxu0 0.0
      %519 = vmatpush1.msra.mxu0 0.0
      %520 = vmatprep.subr.mxu0 0.0
      %521 = vmatpush1.msra.mxu0 0.0
      %522 = vmatprep.subr.mxu0 0.0
      %523 = vmatpush1.msra.mxu0 0.0
      %524 = vmatprep.subr.mxu0 0.0
      %525 = vmatpush1.msra.mxu0 0.0
      %526 = vmatprep.subr.mxu0 0.0
      %527 = vmatpush1.msra.mxu0 0.0
      %528 = vmatprep.subr.mxu0 0.0
      %529 = vmatpush1.msra.mxu0 0.0
      %530 = vmatprep.subr.mxu0 0.0
      %531 = vmatpush1.msra.mxu0 0.0
      %532 = vmatprep.subr.mxu0 0.0
      %533 = vmatpush1.msra.mxu0 0.0
      %534 = vmatprep.subr.mxu0 0.0
      %535 = vmatpush1.msra.mxu0 0.0
      %536 = vmatprep.subr.mxu0 0.0
      %537 = vmatpush1.msra.mxu0 0.0
      %538 = vmatprep.subr.mxu0 0.0
      %539 = vmatpush1.msra.mxu0 0.0
      %540 = vmatprep.mubr.f32.mxu0 0.0
      %541 = vmatmul.mubr.f32.gmra.mrb[0].mxu0 %v445
      %v542 = vpop.f32.mrb[0].mxu0
      %v543 = vadd.f32 %v474, %v542
      %v544 = vpop.f32.mrb[0].mxu0
      %545 = vmatprep.mubr.f32.mxu0 0.0
      %546 = vmatmul.mubr.f32.gmra.mrb[0].mxu0 %v446
      %v547 = vpop.f32.mrb[0].mxu0
      %v548 = vadd.f32 %v474, %v547
      %v549 = vpop.f32.mrb[0].mxu0
      %550 = vmatprep.mubr.f32.mxu0 0.0
      %551 = vmatmul.mubr.f32.gmra.mrb[0].mxu0 %v447
      %v552 = vpop.f32.mrb[0].mxu0
      %v553 = vadd.f32 %v474, %v552
      %v554 = vpop.f32.mrb[0].mxu0
      %555 = vmatprep.mubr.f32.mxu0 0.0
      %556 = vmatmul.mubr.f32.gmra.mrb[0].mxu0 %v448
      %v557 = vpop.f32.mrb[0].mxu0
      %v558 = vadd.f32 %v474, %v557
      %v559 = vpop.f32.mrb[0].mxu0
      %560 = vmatprep.mubr.f32.mxu0 0.0
      %561 = vmatmul.mubr.f32.gmra.mrb[0].mxu0 %v449
      %v562 = vpop.f32.mrb[0].mxu0
      %v563 = vadd.f32 %v474, %v562
      %v564 = vpop.f32.mrb[0].mxu0
      %565 = vmatprep.mubr.f32.mxu0 0.0
      %566 = vmatmul.mubr.f32.gmra.mrb[0].mxu0 %v450
      %v567 = vpop.f32.mrb[0].mxu0
      %v568 = vadd.f32 %v474, %v567
      %v569 = vpop.f32.mrb[0].mxu0
      %570 = vmatprep.mubr.f32.mxu0 0.0
      %571 = vmatmul.mubr.f32.gmra.mrb[0].mxu0 %v451
      %v572 = vpop.f32.mrb[0].mxu0
      %v573 = vadd.f32 %v474, %v572
      %v574 = vpop.f32.mrb[0].mxu0
      %575 = vmatprep.mubr.f32.mxu0 0.0
      %576 = vmatmul.mubr.f32.gmra.mrb[0].mxu0 %v452
      %v577 = vpop.f32.mrb[0].mxu0
      %v578 = vadd.f32 %v474, %v577
      %v579 = vpop.f32.mrb[0].mxu0
      %580 = vdwg.mxu0
      %vm581 = vcmp.ge.f32.partialorder %v543, 0.0
      %vm582 = vcmp.ge.f32.partialorder %v548, 0.0
      %vm583 = vcmp.ge.f32.partialorder %v553, 0.0
      %vm584 = vcmp.ge.f32.partialorder %v558, 0.0
      %vm585 = vcmp.ge.f32.partialorder %v563, 0.0
      %vm586 = vcmp.ge.f32.partialorder %v568, 0.0
      %vm587 = vcmp.ge.f32.partialorder %v573, 0.0
      %vm588 = vcmp.ge.f32.partialorder %v578, 0.0
      %v589 = vmul.f32 %v543, 0.2
      %v590 = vmul.f32 %v548, 0.2
      %v591 = vmul.f32 %v553, 0.2
      %v592 = vmul.f32 %v558, 0.2
      %v593 = vmul.f32 %v563, 0.2
      %v594 = vmul.f32 %v568, 0.2
      %v595 = vmul.f32 %v573, 0.2
      %v596 = vmul.f32 %v578, 0.2
      %v597 = vsel %vm581, %v543, %v589
      %v598 = vsel %vm582, %v548, %v590
      %v599 = vsel %vm583, %v553, %v591
      %v600 = vsel %vm584, %v558, %v592
      %v601 = vsel %vm585, %v563, %v593
      %v602 = vsel %vm586, %v568, %v594
      %v603 = vsel %vm587, %v573, %v595
      %v604 = vsel %vm588, %v578, %v596
      %v605 = vld [vmem:[%s5] sm:$0xff]
      %v606 = vld [vmem:[%s5 + $0x8] sm:$0xff]
      %v607 = vld [vmem:[%s5 + $0x10] sm:$0xff]
      %v608 = vld [vmem:[%s5 + $0x18] sm:$0xff]
      %v609 = vld [vmem:[%s5 + $0x20] sm:$0xff]
      %v610 = vld [vmem:[%s5 + $0x28] sm:$0xff]
      %v611 = vld [vmem:[%s5 + $0x30] sm:$0xff]
      %v612 = vld [vmem:[%s5 + $0x38] sm:$0xff]
      %v613 = vld [vmem:[%s5 + $0x40] sm:$0xff]
      %v614 = vld [vmem:[%s5 + $0x48] sm:$0xff]
      %v615 = vld [vmem:[%s5 + $0x50] sm:$0xff]
      %v616 = vld [vmem:[%s5 + $0x58] sm:$0xff]
      %v617 = vld [vmem:[%s5 + $0x60] sm:$0xff]
      %v618 = vld [vmem:[%s5 + $0x68] sm:$0xff]
      %v619 = vld [vmem:[%s5 + $0x70] sm:$0xff]
      %v620 = vld [vmem:[%s5 + $0x78] sm:$0xff]
      %v621 = vld [vmem:[%s6] sm:$0x1]
      %v623 = vlaneseq
      %v624 = vshrl.u32 %v623, 7
      %v625 = vsub.s32 0, %v624
      %v626 = vrot.slane %v621, %v625
      %628 = vmatprep.subr.mxu0 0.0
      %629 = vmatpush1.msra.mxu0 %v605
      %630 = vmatprep.subr.mxu0 0.0
      %631 = vmatpush1.msra.mxu0 %v606
      %632 = vmatprep.subr.mxu0 0.0
      %633 = vmatpush1.msra.mxu0 %v607
      %634 = vmatprep.subr.mxu0 0.0
      %635 = vmatpush1.msra.mxu0 %v608
      %636 = vmatprep.subr.mxu0 0.0
      %637 = vmatpush1.msra.mxu0 %v609
      %638 = vmatprep.subr.mxu0 0.0
      %639 = vmatpush1.msra.mxu0 %v610
      %640 = vmatprep.subr.mxu0 0.0
      %641 = vmatpush1.msra.mxu0 %v611
      %642 = vmatprep.subr.mxu0 0.0
      %643 = vmatpush1.msra.mxu0 %v612
      %644 = vmatprep.subr.mxu0 0.0
      %645 = vmatpush1.msra.mxu0 %v613
      %646 = vmatprep.subr.mxu0 0.0
      %647 = vmatpush1.msra.mxu0 %v614
      %648 = vmatprep.subr.mxu0 0.0
      %649 = vmatpush1.msra.mxu0 %v615
      %650 = vmatprep.subr.mxu0 0.0
      %651 = vmatpush1.msra.mxu0 %v616
      %652 = vmatprep.subr.mxu0 0.0
      %653 = vmatpush1.msra.mxu0 %v617
      %654 = vmatprep.subr.mxu0 0.0
      %655 = vmatpush1.msra.mxu0 %v618
      %656 = vmatprep.subr.mxu0 0.0
      %657 = vmatpush1.msra.mxu0 %v619
      %658 = vmatprep.subr.mxu0 0.0
      %659 = vmatpush1.msra.mxu0 %v620
      %660 = vmatprep.subr.mxu0 0.0
      %661 = vmatpush1.msra.mxu0 0.0
      %662 = vmatprep.subr.mxu0 0.0
      %663 = vmatpush1.msra.mxu0 0.0
      %664 = vmatprep.subr.mxu0 0.0
      %665 = vmatpush1.msra.mxu0 0.0
      %666 = vmatprep.subr.mxu0 0.0
      %667 = vmatpush1.msra.mxu0 0.0
      %668 = vmatprep.subr.mxu0 0.0
      %669 = vmatpush1.msra.mxu0 0.0
      %670 = vmatprep.subr.mxu0 0.0
      %671 = vmatpush1.msra.mxu0 0.0
      %672 = vmatprep.subr.mxu0 0.0
      %673 = vmatpush1.msra.mxu0 0.0
      %674 = vmatprep.subr.mxu0 0.0
      %675 = vmatpush1.msra.mxu0 0.0
      %676 = vmatprep.subr.mxu0 0.0
      %677 = vmatpush1.msra.mxu0 0.0
      %678 = vmatprep.subr.mxu0 0.0
      %679 = vmatpush1.msra.mxu0 0.0
      %680 = vmatprep.subr.mxu0 0.0
      %681 = vmatpush1.msra.mxu0 0.0
      %682 = vmatprep.subr.mxu0 0.0
      %683 = vmatpush1.msra.mxu0 0.0
      %684 = vmatprep.subr.mxu0 0.0
      %685 = vmatpush1.msra.mxu0 0.0
      %686 = vmatprep.subr.mxu0 0.0
      %687 = vmatpush1.msra.mxu0 0.0
      %688 = vmatprep.subr.mxu0 0.0
      %689 = vmatpush1.msra.mxu0 0.0
      %690 = vmatprep.subr.mxu0 0.0
      %691 = vmatpush1.msra.mxu0 0.0
      %692 = vmatprep.mubr.f32.mxu0 0.0
      %693 = vmatmul.mubr.f32.gmra.mrb[0].mxu0 %v597
      %v694 = vpop.f32.mrb[0].mxu0
      %v695 = vadd.f32 %v626, %v694
      %v696 = vpop.f32.mrb[0].mxu0
      %697 = vmatprep.mubr.f32.mxu0 0.0
      %698 = vmatmul.mubr.f32.gmra.mrb[0].mxu0 %v598
      %v699 = vpop.f32.mrb[0].mxu0
      %v700 = vadd.f32 %v626, %v699
      %v701 = vpop.f32.mrb[0].mxu0
      %702 = vmatprep.mubr.f32.mxu0 0.0
      %703 = vmatmul.mubr.f32.gmra.mrb[0].mxu0 %v599
      %v704 = vpop.f32.mrb[0].mxu0
      %v705 = vadd.f32 %v626, %v704
      %v706 = vpop.f32.mrb[0].mxu0
      %707 = vmatprep.mubr.f32.mxu0 0.0
      %708 = vmatmul.mubr.f32.gmra.mrb[0].mxu0 %v600
      %v709 = vpop.f32.mrb[0].mxu0
      %v710 = vadd.f32 %v626, %v709
      %v711 = vpop.f32.mrb[0].mxu0
      %712 = vmatprep.mubr.f32.mxu0 0.0
      %713 = vmatmul.mubr.f32.gmra.mrb[0].mxu0 %v601
      %v714 = vpop.f32.mrb[0].mxu0
      %v715 = vadd.f32 %v626, %v714
      %v716 = vpop.f32.mrb[0].mxu0
      %717 = vmatprep.mubr.f32.mxu0 0.0
      %718 = vmatmul.mubr.f32.gmra.mrb[0].mxu0 %v602
      %v719 = vpop.f32.mrb[0].mxu0
      %v720 = vadd.f32 %v626, %v719
      %v721 = vpop.f32.mrb[0].mxu0
      %722 = vmatprep.mubr.f32.mxu0 0.0
      %723 = vmatmul.mubr.f32.gmra.mrb[0].mxu0 %v603
      %v724 = vpop.f32.mrb[0].mxu0
      %v725 = vadd.f32 %v626, %v724
      %v726 = vpop.f32.mrb[0].mxu0
      %727 = vmatprep.mubr.f32.mxu0 0.0
      %728 = vmatmul.mubr.f32.gmra.mrb[0].mxu0 %v604
      %v729 = vpop.f32.mrb[0].mxu0
      %v730 = vadd.f32 %v626, %v729
      %v731 = vpop.f32.mrb[0].mxu0
      %732 = vdwg.mxu0
      %vm733 = vcmask 64512
      %734 = vst.msk [vmem:[%s280] sm:$0xff] %vm733, %v695
      %735 = vst.msk [vmem:[%s280 + $0x8] sm:$0xff] %vm733, %v700
      %736 = vst.msk [vmem:[%s280 + $0x10] sm:$0xff] %vm733, %v705
      %737 = vst.msk [vmem:[%s280 + $0x18] sm:$0xff] %vm733, %v710
      %738 = vst.msk [vmem:[%s280 + $0x20] sm:$0xff] %vm733, %v715
      %739 = vst.msk [vmem:[%s280 + $0x28] sm:$0xff] %vm733, %v720
      %740 = vst.msk [vmem:[%s280 + $0x30] sm:$0xff] %vm733, %v725
      %741 = vst.msk [vmem:[%s280 + $0x38] sm:$0xff] %vm733, %v730
      %s742 = smul.u32 8, %s18
      %p743 = scmp.lt.s32.totalorder %s742, 31
      %s744 = scalar_select %p743, %s742, 31
      %s745 = smul.addr %s744, 8
      %s746 = scalar_lea.vmem %s7, %s745
      // Predicated region
      $region49: #{tpu_custom_call.1} parent=47 // pred_check
        %p747 = pneg %p188
      $region50: #{tpu_custom_call.1} parent=47 // pred_check_branch
        %749 = sbr.rel (%p747) target = $region52
      $region51: #{tpu_custom_call.1} parent=47 // pred_region
        %s750 = smul.u32 8, %s18
      $region52: #{tpu_custom_call.1} parent=47 // pred_fallthru
        _
    $region48: #{tpu_custom_call.1} parent=5 // pred_fallthru
      _
    %p751 = scmp.le.s32.totalorder 2, %s13
    // Predicated region
    $region53: #{tpu_custom_call.1} parent=5 // pred_check
      %p752 = pneg %p751
    $region54: #{tpu_custom_call.1} parent=5 // pred_check_branch
      %754 = sbr.rel (%p752) target = $region56
    $region55: #{tpu_custom_call.1} parent=5 // pred_region
      %s755 = ssub.s32 %s13, 2
      // Predicated region
      $region57: #{tpu_custom_call.1} parent=55 // pred_check
        %p756 = pneg %p194
      $region58: #{tpu_custom_call.1} parent=55 // pred_check_branch
        %758 = sbr.rel (%p756) target = $region60
      $region59: #{tpu_custom_call.1} parent=55 // pred_region
        %s759 = smul.u32 8, %s19
        %p760 = scmp.lt.s32.totalorder %s759, 31
        %s761 = scalar_select %p760, %s759, 31
        %s762 = smul.addr %s761, 8
        %s763 = scalar_lea.vmem %s7, %s762
      $region60: #{tpu_custom_call.1} parent=55 // pred_fallthru
        _
    $region56: #{tpu_custom_call.1} parent=5 // pred_fallthru
      _
  $region6: #{tpu_custom_call.1} parent=0 // loop_footer
    %s17 = sadd.s32 1, %s13
  $region7: #{tpu_custom_call.1} parent=0 // loop_footer_branch
    %12 = sbr.rel target = $region3
  $region8: #{tpu_custom_call.1} parent=0 // loop_exit
    _

</llo_original>
